<compile_context>
chip_gen: v5e
topology: v5e:2x2
jax: 0.10.0
libtpu: 0.0.40
codegen_flags: <defaults>
</compile_context>

<pallas_src>
import math
from functools import partial

import jax
import jax.numpy as jnp
from jax import lax
from jax.experimental import pallas as pl
from jax.experimental.pallas import tpu as pltpu


_INV_SQRT2 = 1.0 / math.sqrt(2.0)


def _gelu(h, approx):
    if approx:
        # tanh approximation: runs on the EUP slot (VALU relief, e.g. v5e).
        return jax.nn.gelu(h, approximate=True)
    # exact erf GELU -- matches PyTorch nn.GELU default.
    return 0.5 * h * (1.0 + lax.erf(h * _INV_SQRT2))


# --------------------------------------------------------------------------
# Kernels
# --------------------------------------------------------------------------
def _mlp_resident_kernel(x_ref, w1_ref, b1_ref, w2_ref, b2_ref, o_ref, *,
                         approx_gelu):
    # x_ref : (tm, Cp) bf16     w1_ref: (Cp, D2p) bf16   b1_ref: (1, D2p) f32
    # w2_ref: (D2p, Cp) bf16    b2_ref: (1, Cp) f32      o_ref : (tm, Cp)
    h = jnp.dot(x_ref[...], w1_ref[...], preferred_element_type=jnp.float32)
    h = _gelu(h + b1_ref[...], approx_gelu)
    # drop1 -> identity at inference.
    o = jnp.dot(h.astype(w2_ref.dtype), w2_ref[...],
                preferred_element_type=jnp.float32)
    # drop2 -> identity at inference.
    o_ref[...] = (o + b2_ref[...]).astype(o_ref.dtype)


def _mlp_dtiled_kernel(x_ref, w1_ref, b1_ref, w2_ref, b2_ref, o_ref, acc_ref,
                       *, approx_gelu):
    # Fallback for weights that do not fit VMEM: hidden dim streamed in td
    # chunks along grid axis 1 ("arbitrary"), f32 accumulator in VMEM scratch.
    d = pl.program_id(1)

    h = jnp.dot(x_ref[...], w1_ref[...], preferred_element_type=jnp.float32)
    h = _gelu(h + b1_ref[...], approx_gelu)
    contrib = jnp.dot(h.astype(w2_ref.dtype), w2_ref[...],
                      preferred_element_type=jnp.float32)

    @pl.when(d == 0)
    def _():
        # Seed with b2 + first chunk: avoids a zero-fill store and a later add.
        acc_ref[...] = contrib + b2_ref[...]

    @pl.when(d > 0)
    def _():
        acc_ref[...] += contrib

    @pl.when(d == pl.num_programs(1) - 1)
    def _():
        o_ref[...] = acc_ref[...].astype(o_ref.dtype)


# --------------------------------------------------------------------------
# Wrappers
# --------------------------------------------------------------------------
def _round_up(a, b):
    return (a + b - 1) // b * b


def _vmem_capacity_bytes():
    try:
        info = pltpu.get_tpu_info()
        cap = getattr(info, "vmem_capacity_bytes", None)
        if cap:
            return int(cap)
    except Exception:
        pass
    return 64 << 20   # conservative fallback: v7x per-TensorCore VMEM


def pad_mlp_params(w1, b1, w2, b2, *, compute_dtype=jnp.bfloat16):
    """Pad/cast Linear weights once (hoisted out of the per-step call path)."""
    C, D2 = w1.shape
    assert w2.shape == (D2, C) and b1.shape == (D2,) and b2.shape == (C,)
    Cp, D2p = _round_up(C, 128), _round_up(D2, 128)
    return dict(
        w1=jnp.pad(jnp.asarray(w1, compute_dtype), ((0, Cp - C), (0, D2p - D2))),
        w2=jnp.pad(jnp.asarray(w2, compute_dtype), ((0, D2p - D2), (0, Cp - C))),
        b1=jnp.pad(jnp.asarray(b1, jnp.float32), (0, D2p - D2)).reshape(1, D2p),
        b2=jnp.pad(jnp.asarray(b2, jnp.float32), (0, Cp - C)).reshape(1, Cp),
        C=C, D2=D2, compute_dtype=compute_dtype,
    )


def transformer_mlp_tokens(tokens, params, *, tm=None, td=512,
                           approx_gelu=False):
    """tokens: (N, C) token-major input.  Returns (N, C) in tokens.dtype."""
    n_tok, C = tokens.shape
    assert C == params["C"], "channel mismatch vs prepared params"
    cdt = params["compute_dtype"]
    out_dtype = tokens.dtype
    w1_p, b1_p, w2_p, b2_p = params["w1"], params["b1"], params["w2"], params["b2"]
    Cp, D2p = w1_p.shape
    cb = jnp.dtype(cdt).itemsize
    ob = jnp.dtype(out_dtype).itemsize

    vmem_cap = _vmem_capacity_bytes()
    budget = vmem_cap - (8 << 20)

    # Token tile: generation-aware default, 16-aligned (bf16 sublane packing),
    # shrunk so the "parallel" token axis has >= 2 steps (v7x megacore).
    if tm is None:
        tm = 512 if vmem_cap >= (100 << 20) else 256
    tm = max(16, min(tm, _round_up(n_tok, 16)))
    while tm > 256 and (n_tok + tm - 1) // tm < 2:
        tm = max(256, _round_up(tm // 2, 16))

    def resident_need(tmx):
        return (2 * tmx * Cp * cb                      # x tile (double-buffered)
                + 2 * tmx * Cp * ob                    # out tile
                + 2 * (Cp * D2p + D2p * Cp) * cb       # w1 + w2 (worst case 2 bufs)
                + 2 * (D2p + Cp) * 4                   # biases
                + tmx * D2p * 4                        # GELU f32 intermediate
                + tmx * D2p * cb                       # bf16 recast for matmul 2
                + tmx * Cp * 4)                        # f32 matmul-2 result

    # Prefer the weight-resident path; shrink tm (floor 256) if that is what
    # it takes to keep the weights resident.
    tm_res = tm
    while tm_res > 256 and resident_need(tm_res) > budget:
        tm_res = max(256, _round_up(tm_res // 2, 16))
    use_resident = resident_need(tm_res) <= budget
    if use_resident:
        tm = tm_res

    Np = _round_up(n_tok, tm)
    tokens_p = jnp.pad(tokens.astype(cdt), ((0, Np - n_tok), (0, Cp - C)))

    if use_resident:
        need = resident_need(tm)
        vmem_limit = int(min(max(int(need * 1.3) + (4 << 20), 32 << 20),
                             vmem_cap - (2 << 20)))
        out = pl.pallas_call(
            partial(_mlp_resident_kernel, approx_gelu=approx_gelu),
            out_shape=jax.ShapeDtypeStruct((Np, Cp), out_dtype),
            grid_spec=pltpu.PrefetchScalarGridSpec(
                num_scalar_prefetch=0,
                grid=(Np // tm,),
                in_specs=[
                    pl.BlockSpec((tm, Cp), lambda i: (i, 0)),    # x tile
                    pl.BlockSpec((Cp, D2p), lambda i: (0, 0)),   # w1 (resident)
                    pl.BlockSpec((1, D2p), lambda i: (0, 0)),    # b1 (resident)
                    pl.BlockSpec((D2p, Cp), lambda i: (0, 0)),   # w2 (resident)
                    pl.BlockSpec((1, Cp), lambda i: (0, 0)),     # b2 (resident)
                ],
                out_specs=pl.BlockSpec((tm, Cp), lambda i: (i, 0)),
            ),
            compiler_params=pltpu.CompilerParams(
                dimension_semantics=("parallel",),
                vmem_limit_bytes=vmem_limit),
        )(tokens_p, w1_p, b1_p, w2_p, b2_p)
    else:
        # Huge C*E fallback: stream the hidden dim in td chunks.
        td = min(_round_up(td, 128), D2p)
        D2t = _round_up(D2p, td)
        if D2t != D2p:
            w1_p = jnp.pad(w1_p, ((0, 0), (0, D2t - D2p)))
            b1_p = jnp.pad(b1_p, ((0, 0), (0, D2t - D2p)))
            w2_p = jnp.pad(w2_p, ((0, D2t - D2p), (0, 0)))
        need = (2 * tm * Cp * cb + 2 * tm * Cp * ob
                + 2 * (Cp * td + td * Cp) * cb + 2 * (td + Cp) * 4
                + tm * Cp * 4                   # f32 accumulator scratch
                + tm * td * 4 + tm * td * cb    # GELU f32 + bf16 recast
                + tm * Cp * 4)                  # f32 chunk contribution
        vmem_limit = int(min(max(int(need * 1.3) + (4 << 20), 32 << 20),
                             vmem_cap - (2 << 20)))
        out = pl.pallas_call(
            partial(_mlp_dtiled_kernel, approx_gelu=approx_gelu),
            out_shape=jax.ShapeDtypeStruct((Np, Cp), out_dtype),
            grid_spec=pltpu.PrefetchScalarGridSpec(
                num_scalar_prefetch=0,
                grid=(Np // tm, D2t // td),
                in_specs=[
                    pl.BlockSpec((tm, Cp), lambda i, d: (i, 0)),   # x tile
                    pl.BlockSpec((Cp, td), lambda i, d: (0, d)),   # w1 chunk
                    pl.BlockSpec((1, td), lambda i, d: (0, d)),    # b1 chunk
                    pl.BlockSpec((td, Cp), lambda i, d: (d, 0)),   # w2 chunk
                    pl.BlockSpec((1, Cp), lambda i, d: (0, 0)),    # b2
                ],
                out_specs=pl.BlockSpec((tm, Cp), lambda i, d: (i, 0)),
                scratch_shapes=[pltpu.VMEM((tm, Cp), jnp.float32)],
            ),
            compiler_params=pltpu.CompilerParams(
                dimension_semantics=("parallel", "arbitrary"),
                vmem_limit_bytes=vmem_limit),
        )(tokens_p, w1_p, b1_p, w2_p, b2_p)

    return out[:n_tok, :C]


def transformer_mlp(x_nchw, params, **kwargs):
    """NCHW module-interface wrapper.  Prefer transformer_mlp_tokens() (or an
    NHWC-native caller / allow_input_fusion) to avoid the transpose copies."""
    B, C, H, W = x_nchw.shape
    # b c h w -> (b h w) c
    tokens = jnp.transpose(x_nchw, (0, 2, 3, 1)).reshape(B * H * W, C)
    out = transformer_mlp_tokens(tokens, params, **kwargs)
    # (b h w) c -> b c h w
    return jnp.transpose(out.reshape(B, H, W, C), (0, 3, 1, 2))


def _init_linear(key, in_dim, out_dim):
    # Deterministic init mimicking nn.Linear's uniform(-1/sqrt(in), 1/sqrt(in)).
    kw, kb = jax.random.split(key)
    bound = 1.0 / math.sqrt(in_dim)
    w = jax.random.uniform(kw, (in_dim, out_dim), jnp.float32, -bound, bound)
    b = jax.random.uniform(kb, (out_dim,), jnp.float32, -bound, bound)
    return w, b


if __name__ == "__main__":
    key = jax.random.PRNGKey(0)
    kx, k1, k2 = jax.random.split(key, 3)

    # TransformerMLP(channels=4, expansion=4, drop=0.0)
    B, C, H, W = 2, 4, 16, 16
    expansion = 4
    D2 = C * expansion

    x = jax.random.normal(kx, (B, C, H, W), jnp.float32)
    w1, b1 = _init_linear(k1, C, D2)
    w2, b2 = _init_linear(k2, D2, C)

    params = pad_mlp_params(w1, b1, w2, b2)          # padded/cast once
    mlp = jax.jit(lambda xx: transformer_mlp(xx, params))
    y = jax.block_until_ready(mlp(x))

    # Pure-JAX reference (same bf16-operand / f32-accumulate recipe).
    tok = jnp.transpose(x, (0, 2, 3, 1)).reshape(-1, C)
    h = jnp.dot(tok.astype(jnp.bfloat16), w1.astype(jnp.bfloat16),
                preferred_element_type=jnp.float32) + b1
    h = 0.5 * h * (1.0 + lax.erf(h * _INV_SQRT2))
    o = jnp.dot(h.astype(jnp.bfloat16), w2.astype(jnp.bfloat16),
                preferred_element_type=jnp.float32) + b2
    ref = jnp.transpose(o.reshape(B, H, W, C), (0, 3, 1, 2)).astype(x.dtype)
    assert jnp.allclose(y, ref, atol=5e-3, rtol=5e-3), "mismatch vs reference"

    print("KERNEL_OK")
</pallas_src>

<mosaic_0001>
module attributes {stable_mosaic.version = 11 : i64} {
  func.func @_mlp_resident_kernel(%arg0: i32, %arg1: memref<256x128xbf16, #tpu.memory_space<vmem>>, %arg2: memref<128x128xbf16, #tpu.memory_space<vmem>>, %arg3: memref<1x128xf32, #tpu.memory_space<vmem>>, %arg4: memref<128x128xbf16, #tpu.memory_space<vmem>>, %arg5: memref<1x128xf32, #tpu.memory_space<vmem>>, %arg6: memref<256x128xf32, #tpu.memory_space<vmem>>) attributes {dimension_semantics = [#tpu.dimension_semantics<parallel>], iteration_bounds = array<i64: 2>, scalar_prefetch = 0 : i64, scratch_operands = 0 : i64, tpu.core_type = #tpu.core_type<tc>, window_params = [{transform_indices = @transform_0, window_bounds = array<i64: 256, 128>}, {pipeline_mode = #tpu.pipeline_mode<synchronous>, transform_indices = @transform_1, window_bounds = array<i64: 128, 128>}, {pipeline_mode = #tpu.pipeline_mode<synchronous>, transform_indices = @transform_2, window_bounds = array<i64: 1, 128>}, {pipeline_mode = #tpu.pipeline_mode<synchronous>, transform_indices = @transform_3, window_bounds = array<i64: 128, 128>}, {pipeline_mode = #tpu.pipeline_mode<synchronous>, transform_indices = @transform_4, window_bounds = array<i64: 1, 128>}, {transform_indices = @transform_5, window_bounds = array<i64: 256, 128>}]} {
    %c0 = arith.constant 0 : index
    %c0_0 = arith.constant 0 : index
    %0 = vector.load %arg1[%c0, %c0_0] : memref<256x128xbf16, #tpu.memory_space<vmem>>, vector<256x128xbf16>
    %c0_1 = arith.constant 0 : index
    %c0_2 = arith.constant 0 : index
    %1 = vector.load %arg2[%c0_1, %c0_2] : memref<128x128xbf16, #tpu.memory_space<vmem>>, vector<128x128xbf16>
    %cst = arith.constant dense<0.000000e+00> : vector<256x128xf32>
    %2 = tpu.matmul %0, %1, %cst {dimension_numbers = #tpu.dot_dimension_numbers<[1], [0], [0], [1], [0, 0, 1, 1], [], []>} : vector<256x128xbf16>, vector<128x128xbf16>, vector<256x128xf32> -> vector<256x128xf32>
    %c0_3 = arith.constant 0 : index
    %c0_4 = arith.constant 0 : index
    %3 = vector.load %arg3[%c0_3, %c0_4] : memref<1x128xf32, #tpu.memory_space<vmem>>, vector<1x128xf32>
    %4 = vector.broadcast %3 : vector<1x128xf32> to vector<256x128xf32>
    %5 = arith.addf %2, %4 : vector<256x128xf32>
    %cst_5 = arith.constant 5.000000e-01 : f32
    %6 = vector.broadcast %cst_5 : f32 to vector<256x128xf32>
    %7 = arith.mulf %6, %5 : vector<256x128xf32>
    %cst_6 = arith.constant 0.707106769 : f32
    %8 = vector.broadcast %cst_6 : f32 to vector<256x128xf32>
    %9 = arith.mulf %5, %8 : vector<256x128xf32>
    %10 = math.erf %9 : vector<256x128xf32>
    %cst_7 = arith.constant 1.000000e+00 : f32
    %11 = vector.broadcast %cst_7 : f32 to vector<256x128xf32>
    %12 = arith.addf %11, %10 : vector<256x128xf32>
    %13 = arith.mulf %7, %12 : vector<256x128xf32>
    %14 = arith.truncf %13 : vector<256x128xf32> to vector<256x128xbf16>
    %c0_8 = arith.constant 0 : index
    %c0_9 = arith.constant 0 : index
    %15 = vector.load %arg4[%c0_8, %c0_9] : memref<128x128xbf16, #tpu.memory_space<vmem>>, vector<128x128xbf16>
    %cst_10 = arith.constant dense<0.000000e+00> : vector<256x128xf32>
    %16 = tpu.matmul %14, %15, %cst_10 {dimension_numbers = #tpu.dot_dimension_numbers<[1], [0], [0], [1], [0, 0, 1, 1], [], []>} : vector<256x128xbf16>, vector<128x128xbf16>, vector<256x128xf32> -> vector<256x128xf32>
    %c0_11 = arith.constant 0 : index
    %c0_12 = arith.constant 0 : index
    %17 = vector.load %arg5[%c0_11, %c0_12] : memref<1x128xf32, #tpu.memory_space<vmem>>, vector<1x128xf32>
    %18 = vector.broadcast %17 : vector<1x128xf32> to vector<256x128xf32>
    %19 = arith.addf %16, %18 : vector<256x128xf32>
    %c0_13 = arith.constant 0 : index
    %c0_14 = arith.constant 0 : index
    %20 = vector.load %arg6[%c0_13, %c0_14] : memref<256x128xf32, #tpu.memory_space<vmem>>, vector<256x128xf32>
    tpu.vector_store %arg6[%c0_13, %c0_14], %19 {strides = array<i32>} : memref<256x128xf32, #tpu.memory_space<vmem>>, vector<256x128xf32>,
    return
  }
  func.func @transform_0(%arg0: i32) -> (i32, i32) {
    %c0_i32 = arith.constant 0 : i32
    %c0_i32_0 = arith.constant 0 : i32
    return %arg0, %c0_i32 : i32, i32
  }
  func.func @transform_1(%arg0: i32) -> (i32, i32) {
    %c0_i32 = arith.constant 0 : i32
    %c0_i32_0 = arith.constant 0 : i32
    %c0_i32_1 = arith.constant 0 : i32
    return %c0_i32, %c0_i32_0 : i32, i32
  }
  func.func @transform_2(%arg0: i32) -> (i32, i32) {
    %c0_i32 = arith.constant 0 : i32
    %c0_i32_0 = arith.constant 0 : i32
    %c0_i32_1 = arith.constant 0 : i32
    return %c0_i32, %c0_i32_0 : i32, i32
  }
  func.func @transform_3(%arg0: i32) -> (i32, i32) {
    %c0_i32 = arith.constant 0 : i32
    %c0_i32_0 = arith.constant 0 : i32
    %c0_i32_1 = arith.constant 0 : i32
    return %c0_i32, %c0_i32_0 : i32, i32
  }
  func.func @transform_4(%arg0: i32) -> (i32, i32) {
    %c0_i32 = arith.constant 0 : i32
    %c0_i32_0 = arith.constant 0 : i32
    %c0_i32_1 = arith.constant 0 : i32
    return %c0_i32, %c0_i32_0 : i32, i32
  }
  func.func @transform_5(%arg0: i32) -> (i32, i32) {
    %c0_i32 = arith.constant 0 : i32
    %c0_i32_0 = arith.constant 0 : i32
    return %arg0, %c0_i32 : i32, i32
  }
}

</mosaic_0001>

<llo_original>
// kernel: _lambda_.1
$region0: #{_lambda_.1}
  #allocation0 [shape = 'u32[]', space=smem, size = 0x4, offset = 0x4, fixed_abs, tag = 'smem constant byte address 0x4 - core index']
  #allocation1 [shape = 'u32[72,128]{1,0:T(1,128)}', space=vmem, size = 0x9000, scoped, tag = 'internal scratch']
  %s0 = inlined_call_operand.vmem [shape: bf16[512,128], index: 0, kind: input, shape index: {}]
  %s1 = inlined_call_operand.vmem [shape: bf16[128,128], index: 1, kind: input, shape index: {}]
  %s2 = inlined_call_operand.vmem [shape: f32[1,128], index: 2, kind: input, shape index: {}]
  %s3 = inlined_call_operand.vmem [shape: bf16[128,128], index: 3, kind: input, shape index: {}]
  %s4 = inlined_call_operand.vmem [shape: f32[1,128], index: 4, kind: input, shape index: {}]
  %s5 = inlined_call_operand.vmem [shape: f32[512,128], index: 5, kind: output, shape index: {}]
  %s6 = sld [smem:[#allocation0]]
  $region53: #{_lambda_.1} parent=0
    _
  %s8 = ssub.s32 1, %s6
  %s9 = scalar_select 0, %s8, %s6
  loop: start=0, step=1, limit=4
  $region2: #{_lambda_.1} parent=0 // loop_pre_header
    _
  $region3: #{_lambda_.1} parent=0 // loop_header
    %s11 = sphi 0, %s15
    %p12 = scmp.ge.s32.totalorder %s11, 4
    %s21 = sphi 0, %s23
    %s24 = sphi 0, %s21
    %s25 = sphi 0, %s24
    %s41 = sphi 0, %s25
    %s45 = sphi 0, %s45
    %s47 = sphi 0, %s45
    %s48 = sphi 0, %s47
    %s62 = sphi 0, %s48
    %s66 = sphi 0, %s66
    %s68 = sphi 0, %s66
    %s69 = sphi 0, %s68
    %s83 = sphi 0, %s69
    %s87 = sphi 0, %s87
    %s89 = sphi 0, %s87
    %s90 = sphi 0, %s89
    %s104 = sphi 0, %s90
    %s108 = sphi 0, %s108
    %s110 = sphi 0, %s108
    %s111 = sphi 0, %s110
    %s125 = sphi 0, %s111
    %s131 = sphi 0, %s133
    %s134 = sphi 0, %s131
    %s135 = sphi 0, %s134
    %s151 = sphi 0, %s135
  $region4: #{_lambda_.1} parent=0 // loop_header_branch
    %14 = sbr.rel (%p12) target = $region8
  $region5: #{_lambda_.1} parent=0 // loop_body
    %s16 = ssub.s32 %s11, 1
    %s17 = ssub.s32 %s11, 2
    %s18 = sadd.s32 %s11, 1
    %s19 = ssub.s32 %s11, %s18
    %p20 = scmp.eq.s32.totalorder %s19, 0
    %s22 = sadd.s32 %s21, 1
    %s23 = scalar_select %p20, %s21, %s22
    %p26 = pneg %p20
    %p27 = scmp.eq.s32.totalorder %s11, 1
    %p28 = por %p26, %p27
    %p29 = scmp.ne.s32.totalorder %s21, %s24
    %p30 = scmp.eq.s32.totalorder %s11, 0
    %p31 = por %p29, %p30
    %p32 = scmp.ne.s32.totalorder %s21, %s24
    %p33 = scmp.eq.s32.totalorder %s16, 1
    %p34 = por %p32, %p33
    %p35 = scmp.ne.s32.totalorder %s24, %s25
    %p36 = scmp.eq.s32.totalorder %s16, 0
    %p37 = por %p35, %p36
    %p38 = scmp.ne.s32.totalorder %s24, %s25
    %p39 = scmp.eq.s32.totalorder %s17, 1
    %p40 = por %p38, %p39
    %p42 = scmp.ne.s32.totalorder %s25, %s41
    %p43 = scmp.eq.s32.totalorder %s17, 0
    %p44 = por %p42, %p43
    %s46 = sadd.s32 %s45, 1
    %p49 = scmp.eq.s32.totalorder %s11, 1
    %p50 = scmp.ne.s32.totalorder %s45, %s47
    %p51 = scmp.eq.s32.totalorder %s11, 0
    %p52 = por %p50, %p51
    %p53 = scmp.ne.s32.totalorder %s45, %s47
    %p54 = scmp.eq.s32.totalorder %s16, 1
    %p55 = por %p53, %p54
    %p56 = scmp.ne.s32.totalorder %s47, %s48
    %p57 = scmp.eq.s32.totalorder %s16, 0
    %p58 = por %p56, %p57
    %p59 = scmp.ne.s32.totalorder %s47, %s48
    %p60 = scmp.eq.s32.totalorder %s17, 1
    %p61 = por %p59, %p60
    %p63 = scmp.ne.s32.totalorder %s48, %s62
    %p64 = scmp.eq.s32.totalorder %s17, 0
    %p65 = por %p63, %p64
    %s67 = sadd.s32 %s66, 1
    %p70 = scmp.eq.s32.totalorder %s11, 1
    %p71 = scmp.ne.s32.totalorder %s66, %s68
    %p72 = scmp.eq.s32.totalorder %s11, 0
    %p73 = por %p71, %p72
    %p74 = scmp.ne.s32.totalorder %s66, %s68
    %p75 = scmp.eq.s32.totalorder %s16, 1
    %p76 = por %p74, %p75
    %p77 = scmp.ne.s32.totalorder %s68, %s69
    %p78 = scmp.eq.s32.totalorder %s16, 0
    %p79 = por %p77, %p78
    %p80 = scmp.ne.s32.totalorder %s68, %s69
    %p81 = scmp.eq.s32.totalorder %s17, 1
    %p82 = por %p80, %p81
    %p84 = scmp.ne.s32.totalorder %s69, %s83
    %p85 = scmp.eq.s32.totalorder %s17, 0
    %p86 = por %p84, %p85
    %s88 = sadd.s32 %s87, 1
    %p91 = scmp.eq.s32.totalorder %s11, 1
    %p92 = scmp.ne.s32.totalorder %s87, %s89
    %p93 = scmp.eq.s32.totalorder %s11, 0
    %p94 = por %p92, %p93
    %p95 = scmp.ne.s32.totalorder %s87, %s89
    %p96 = scmp.eq.s32.totalorder %s16, 1
    %p97 = por %p95, %p96
    %p98 = scmp.ne.s32.totalorder %s89, %s90
    %p99 = scmp.eq.s32.totalorder %s16, 0
    %p100 = por %p98, %p99
    %p101 = scmp.ne.s32.totalorder %s89, %s90
    %p102 = scmp.eq.s32.totalorder %s17, 1
    %p103 = por %p101, %p102
    %p105 = scmp.ne.s32.totalorder %s90, %s104
    %p106 = scmp.eq.s32.totalorder %s17, 0
    %p107 = por %p105, %p106
    %s109 = sadd.s32 %s108, 1
    %p112 = scmp.eq.s32.totalorder %s11, 1
    %p113 = scmp.ne.s32.totalorder %s108, %s110
    %p114 = scmp.eq.s32.totalorder %s11, 0
    %p115 = por %p113, %p114
    %p116 = scmp.ne.s32.totalorder %s108, %s110
    %p117 = scmp.eq.s32.totalorder %s16, 1
    %p118 = por %p116, %p117
    %p119 = scmp.ne.s32.totalorder %s110, %s111
    %p120 = scmp.eq.s32.totalorder %s16, 0
    %p121 = por %p119, %p120
    %p122 = scmp.ne.s32.totalorder %s110, %s111
    %p123 = scmp.eq.s32.totalorder %s17, 1
    %p124 = por %p122, %p123
    %p126 = scmp.ne.s32.totalorder %s111, %s125
    %p127 = scmp.eq.s32.totalorder %s17, 0
    %p128 = por %p126, %p127
    %s129 = ssub.s32 %s11, %s18
    %p130 = scmp.eq.s32.totalorder %s129, 0
    %s132 = sadd.s32 %s131, 1
    %s133 = scalar_select %p130, %s131, %s132
    %p136 = pneg %p130
    %p137 = scmp.eq.s32.totalorder %s11, 1
    %p138 = por %p136, %p137
    %p139 = scmp.ne.s32.totalorder %s131, %s134
    %p140 = scmp.eq.s32.totalorder %s11, 0
    %p141 = por %p139, %p140
    %p142 = scmp.ne.s32.totalorder %s131, %s134
    %p143 = scmp.eq.s32.totalorder %s16, 1
    %p144 = por %p142, %p143
    %p145 = scmp.ne.s32.totalorder %s134, %s135
    %p146 = scmp.eq.s32.totalorder %s16, 0
    %p147 = por %p145, %p146
    %p148 = scmp.ne.s32.totalorder %s134, %s135
    %p149 = scmp.eq.s32.totalorder %s17, 1
    %p150 = por %p148, %p149
    %p152 = scmp.ne.s32.totalorder %s135, %s151
    %p153 = scmp.eq.s32.totalorder %s17, 0
    %p154 = por %p152, %p153
    %p155 = scmp.le.s32.totalorder 1, %s11
    %p156 = scmp.lt.s32.totalorder %s11, 3
    %p157 = pnand %p155, %p156
    %p158 = pneg %p157
    // Predicated region
    $region9: #{_lambda_.1} parent=5 // pred_check
      _
    $region10: #{_lambda_.1} parent=5 // pred_check_branch
      %160 = sbr.rel (%p157) target = $region12
    $region11: #{_lambda_.1} parent=5 // pred_region
      %s161 = ssub.s32 %s11, 1
      // Predicated region
      $region13: #{_lambda_.1} parent=11 // pred_check
        %p162 = pneg %p58
      $region14: #{_lambda_.1} parent=11 // pred_check_branch
        %164 = sbr.rel (%p162) target = $region16
      $region15: #{_lambda_.1} parent=11 // pred_region
        _
      $region16: #{_lambda_.1} parent=11 // pred_fallthru
        _
      // Predicated region
      $region17: #{_lambda_.1} parent=11 // pred_check
        %p165 = pneg %p79
      $region18: #{_lambda_.1} parent=11 // pred_check_branch
        %167 = sbr.rel (%p165) target = $region20
      $region19: #{_lambda_.1} parent=11 // pred_region
        _
      $region20: #{_lambda_.1} parent=11 // pred_fallthru
        _
      // Predicated region
      $region21: #{_lambda_.1} parent=11 // pred_check
        %p168 = pneg %p100
      $region22: #{_lambda_.1} parent=11 // pred_check_branch
        %170 = sbr.rel (%p168) target = $region24
      $region23: #{_lambda_.1} parent=11 // pred_region
        _
      $region24: #{_lambda_.1} parent=11 // pred_fallthru
        _
      // Predicated region
      $region25: #{_lambda_.1} parent=11 // pred_check
        %p171 = pneg %p121
      $region26: #{_lambda_.1} parent=11 // pred_check_branch
        %173 = sbr.rel (%p171) target = $region28
      $region27: #{_lambda_.1} parent=11 // pred_region
        _
      $region28: #{_lambda_.1} parent=11 // pred_fallthru
        _
    $region12: #{_lambda_.1} parent=5 // pred_fallthru
      _
    %p174 = scmp.lt.s32.totalorder %s11, 2
    // Predicated region
    $region29: #{_lambda_.1} parent=5 // pred_check
      %p175 = pneg %p174
    $region30: #{_lambda_.1} parent=5 // pred_check_branch
      %177 = sbr.rel (%p175) target = $region32
    $region31: #{_lambda_.1} parent=5 // pred_region
      // Predicated region
      $region33: #{_lambda_.1} parent=31 // pred_check
        %p178 = pneg %p31
      $region34: #{_lambda_.1} parent=31 // pred_check_branch
        %180 = sbr.rel (%p178) target = $region36
      $region35: #{_lambda_.1} parent=31 // pred_region
        %s181 = smul.u32 32, %s11
        %p182 = scmp.lt.s32.totalorder %s181, 63
        %s183 = scalar_select %p182, %s181, 63
        %s184 = smul.addr %s183, 4
        %s185 = scalar_lea.vmem %s0, %s184
        %s186 = smul.u32 32, %s11
      $region36: #{_lambda_.1} parent=31 // pred_fallthru
        _
    $region32: #{_lambda_.1} parent=5 // pred_fallthru
      _
    %p187 = scmp.le.s32.totalorder 1, %s11
    %p188 = scmp.lt.s32.totalorder %s11, 3
    %p189 = pnand %p187, %p188
    %p190 = pneg %p189
    // Predicated region
    $region37: #{_lambda_.1} parent=5 // pred_check
      _
    $region38: #{_lambda_.1} parent=5 // pred_check_branch
      %192 = sbr.rel (%p189) target = $region40
    $region39: #{_lambda_.1} parent=5 // pred_region
      %s193 = ssub.s32 %s11, 1
      %s194 = smul.u32 32, %s16
      %p195 = scmp.lt.s32.totalorder %s194, 63
      %s196 = scalar_select %p195, %s194, 63
      %s197 = smul.addr %s196, 4
      %s198 = scalar_lea.vmem %s0, %s197
      %p199 = pneg %p37
      %p200 = pneg %p34
      %p201 = pneg %p58
      %p202 = pneg %p55
      %p203 = pneg %p79
      %p204 = pneg %p76
      %p205 = pneg %p100
      %p206 = pneg %p97
      %p207 = pneg %p121
      %p208 = pneg %p118
      %p209 = pneg %p147
      %p210 = pneg %p144
      %s211 = smul.u32 32, %s16
      %p212 = scmp.lt.s32.totalorder %s211, 63
      %s213 = scalar_select %p212, %s211, 63
      %s214 = smul.addr %s213, 8
      %s215 = scalar_lea.vmem %s5, %s214
      %s216 = smul.u32 32, %s16
      %p217 = scmp.lt.s32.totalorder %s216, 63
      %s218 = scalar_select %p217, %s216, 63
      %s219 = smul.addr %s218, 4
      %s220 = scalar_lea.vmem %s0, %s219
      %s221 = smul.u32 32, %s16
      %s222 = smul.u32 32, %s16
      %p223 = scmp.lt.s32.totalorder %s222, 63
      %s224 = scalar_select %p223, %s222, 63
      %s225 = smul.addr %s224, 8
      %s226 = scalar_lea.vmem %s5, %s225
      %s227 = smul.u32 32, %s16
      %v228 = vld [vmem:[%s220] sm:$0xf]
      %v229 = vld [vmem:[%s220 + $0x4] sm:$0xf]
      %v230 = vld [vmem:[%s220 + $0x8] sm:$0xf]
      %v231 = vld [vmem:[%s220 + $0xc] sm:$0xf]
      %v232 = vld [vmem:[%s220 + $0x10] sm:$0xf]
      %v233 = vld [vmem:[%s220 + $0x14] sm:$0xf]
      %v234 = vld [vmem:[%s220 + $0x18] sm:$0xf]
      %v235 = vld [vmem:[%s220 + $0x1c] sm:$0xf]
      %v236 = vld [vmem:[%s220 + $0x20] sm:$0xf]
      %v237 = vld [vmem:[%s220 + $0x24] sm:$0xf]
      %v238 = vld [vmem:[%s220 + $0x28] sm:$0xf]
      %v239 = vld [vmem:[%s220 + $0x2c] sm:$0xf]
      %v240 = vld [vmem:[%s220 + $0x30] sm:$0xf]
      %v241 = vld [vmem:[%s220 + $0x34] sm:$0xf]
      %v242 = vld [vmem:[%s220 + $0x38] sm:$0xf]
      %v243 = vld [vmem:[%s220 + $0x3c] sm:$0xf]
      %v244 = vld [vmem:[%s220 + $0x40] sm:$0xf]
      %v245 = vld [vmem:[%s220 + $0x44] sm:$0xf]
      %v246 = vld [vmem:[%s220 + $0x48] sm:$0xf]
      %v247 = vld [vmem:[%s220 + $0x4c] sm:$0xf]
      %v248 = vld [vmem:[%s220 + $0x50] sm:$0xf]
      %v249 = vld [vmem:[%s220 + $0x54] sm:$0xf]
      %v250 = vld [vmem:[%s220 + $0x58] sm:$0xf]
      %v251 = vld [vmem:[%s220 + $0x5c] sm:$0xf]
      %v252 = vld [vmem:[%s220 + $0x60] sm:$0xf]
      %v253 = vld [vmem:[%s220 + $0x64] sm:$0xf]
      %v254 = vld [vmem:[%s220 + $0x68] sm:$0xf]
      %v255 = vld [vmem:[%s220 + $0x6c] sm:$0xf]
      %v256 = vld [vmem:[%s220 + $0x70] sm:$0xf]
      %v257 = vld [vmem:[%s220 + $0x74] sm:$0xf]
      %v258 = vld [vmem:[%s220 + $0x78] sm:$0xf]
      %v259 = vld [vmem:[%s220 + $0x7c] sm:$0xf]
      %v260 = vld [vmem:[%s1] sm:$0xf]
      %v261 = vld [vmem:[%s1 + $0x4] sm:$0xf]
      %v262 = vld [vmem:[%s1 + $0x8] sm:$0xf]
      %v263 = vld [vmem:[%s1 + $0xc] sm:$0xf]
      %v264 = vld [vmem:[%s1 + $0x10] sm:$0xf]
      %v265 = vld [vmem:[%s1 + $0x14] sm:$0xf]
      %v266 = vld [vmem:[%s1 + $0x18] sm:$0xf]
      %v267 = vld [vmem:[%s1 + $0x1c] sm:$0xf]
      %v268 = vld [vmem:[%s1 + $0x20] sm:$0xf]
      %v269 = vld [vmem:[%s1 + $0x24] sm:$0xf]
      %v270 = vld [vmem:[%s1 + $0x28] sm:$0xf]
      %v271 = vld [vmem:[%s1 + $0x2c] sm:$0xf]
      %v272 = vld [vmem:[%s1 + $0x30] sm:$0xf]
      %v273 = vld [vmem:[%s1 + $0x34] sm:$0xf]
      %v274 = vld [vmem:[%s1 + $0x38] sm:$0xf]
      %v275 = vld [vmem:[%s1 + $0x3c] sm:$0xf]
      %v276 = vld [vmem:[%s2] sm:$0x1]
      %v278 = vperm.slane %v276, 0
      %v312 = vunpack.c.l.b16 %v228
      %v313 = vunpack.c.l.b16 %v229
      %v314 = vunpack.c.l.b16 %v230
      %v315 = vunpack.c.l.b16 %v231
      %v316 = vunpack.c.l.b16 %v232
      %v317 = vunpack.c.l.b16 %v233
      %v318 = vunpack.c.l.b16 %v234
      %v319 = vunpack.c.l.b16 %v235
      %v320 = vunpack.c.l.b16 %v236
      %v321 = vunpack.c.l.b16 %v237
      %v322 = vunpack.c.l.b16 %v238
      %v323 = vunpack.c.l.b16 %v239
      %v324 = vunpack.c.l.b16 %v240
      %v325 = vunpack.c.l.b16 %v241
      %v326 = vunpack.c.l.b16 %v242
      %v327 = vunpack.c.l.b16 %v243
      %v328 = vunpack.c.l.b16 %v244
      %v329 = vunpack.c.l.b16 %v245
      %v330 = vunpack.c.l.b16 %v246
      %v331 = vunpack.c.l.b16 %v247
      %v332 = vunpack.c.l.b16 %v248
      %v333 = vunpack.c.l.b16 %v249
      %v334 = vunpack.c.l.b16 %v250
      %v335 = vunpack.c.l.b16 %v251
      %v336 = vunpack.c.l.b16 %v252
      %v337 = vunpack.c.l.b16 %v253
      %v338 = vunpack.c.l.b16 %v254
      %v339 = vunpack.c.l.b16 %v255
      %v340 = vunpack.c.l.b16 %v256
      %v341 = vunpack.c.l.b16 %v257
      %v342 = vunpack.c.l.b16 %v258
      %v343 = vunpack.c.l.b16 %v259
      %v344 = vpack.c.b16 %v313, %v312
      %v345 = vpack.c.b16 %v315, %v314
      %v346 = vpack.c.b16 %v317, %v316
      %v347 = vpack.c.b16 %v319, %v318
      %v348 = vpack.c.b16 %v321, %v320
      %v349 = vpack.c.b16 %v323, %v322
      %v350 = vpack.c.b16 %v325, %v324
      %v351 = vpack.c.b16 %v327, %v326
      %v352 = vpack.c.b16 %v329, %v328
      %v353 = vpack.c.b16 %v331, %v330
      %v354 = vpack.c.b16 %v333, %v332
      %v355 = vpack.c.b16 %v335, %v334
      %v356 = vpack.c.b16 %v337, %v336
      %v357 = vpack.c.b16 %v339, %v338
      %v358 = vpack.c.b16 %v341, %v340
      %v359 = vpack.c.b16 %v343, %v342
      %v392 = vunpack.c.l.b16 %v260
      %v393 = vunpack.c.l.b16 %v261
      %v394 = vunpack.c.l.b16 %v262
      %v395 = vunpack.c.l.b16 %v263
      %v396 = vunpack.c.l.b16 %v264
      %v397 = vunpack.c.l.b16 %v265
      %v398 = vunpack.c.l.b16 %v266
      %v399 = vunpack.c.l.b16 %v267
      %v400 = vunpack.c.l.b16 %v268
      %v401 = vunpack.c.l.b16 %v269
      %v402 = vunpack.c.l.b16 %v270
      %v403 = vunpack.c.l.b16 %v271
      %v404 = vunpack.c.l.b16 %v272
      %v405 = vunpack.c.l.b16 %v273
      %v406 = vunpack.c.l.b16 %v274
      %v407 = vunpack.c.l.b16 %v275
      %v408 = vpack.c.b16 %v393, %v392
      %v409 = vpack.c.b16 %v395, %v394
      %v410 = vpack.c.b16 %v397, %v396
      %v411 = vpack.c.b16 %v399, %v398
      %v412 = vpack.c.b16 %v401, %v400
      %v413 = vpack.c.b16 %v403, %v402
      %v414 = vpack.c.b16 %v405, %v404
      %v415 = vpack.c.b16 %v407, %v406
      %424 = vmatpush.bf16.msra.mxu0 %v415
      %425 = vmatpush.bf16.msra.mxu0 %v414
      %426 = vmatpush.bf16.msra.mxu0 %v413
      %427 = vmatpush.bf16.msra.mxu0 %v412
      %428 = vmatpush.bf16.msra.mxu0 %v411
      %429 = vmatpush.bf16.msra.mxu0 %v410
      %430 = vmatpush.bf16.msra.mxu0 %v409
      %431 = vmatpush.bf16.msra.mxu0 %v408
      %432 = vmatmul.bf16.gmra.mxu0 %v344
      %v433 = vpop.f32.mrf.mxu0
      %v434 = vadd.f32 %v278, %v433
      %v435 = vpop.f32.mrf.mxu0
      %v436 = vadd.f32 %v278, %v435
      %437 = vmatmul.bf16.gmra.mxu0 %v345
      %v438 = vpop.f32.mrf.mxu0
      %v439 = vadd.f32 %v278, %v438
      %v440 = vpop.f32.mrf.mxu0
      %v441 = vadd.f32 %v278, %v440
      %442 = vmatmul.bf16.gmra.mxu0 %v346
      %v443 = vpop.f32.mrf.mxu0
      %v444 = vadd.f32 %v278, %v443
      %v445 = vpop.f32.mrf.mxu0
      %v446 = vadd.f32 %v278, %v445
      %447 = vmatmul.bf16.gmra.mxu0 %v347
      %v448 = vpop.f32.mrf.mxu0
      %v449 = vadd.f32 %v278, %v448
      %v450 = vpop.f32.mrf.mxu0
      %v451 = vadd.f32 %v278, %v450
      %452 = vmatmul.bf16.gmra.mxu0 %v348
      %v453 = vpop.f32.mrf.mxu0
      %v454 = vadd.f32 %v278, %v453
      %v455 = vpop.f32.mrf.mxu0
      %v456 = vadd.f32 %v278, %v455
      %457 = vmatmul.bf16.gmra.mxu0 %v349
      %v458 = vpop.f32.mrf.mxu0
      %v459 = vadd.f32 %v278, %v458
      %v460 = vpop.f32.mrf.mxu0
      %v461 = vadd.f32 %v278, %v460
      %462 = vmatmul.bf16.gmra.mxu0 %v350
      %v463 = vpop.f32.mrf.mxu0
      %v464 = vadd.f32 %v278, %v463
      %v465 = vpop.f32.mrf.mxu0
      %v466 = vadd.f32 %v278, %v465
      %467 = vmatmul.bf16.gmra.mxu0 %v351
      %v468 = vpop.f32.mrf.mxu0
      %v469 = vadd.f32 %v278, %v468
      %v470 = vpop.f32.mrf.mxu0
      %v471 = vadd.f32 %v278, %v470
      %472 = vmatmul.bf16.gmra.mxu0 %v352
      %v473 = vpop.f32.mrf.mxu0
      %v474 = vadd.f32 %v278, %v473
      %v475 = vpop.f32.mrf.mxu0
      %v476 = vadd.f32 %v278, %v475
      %477 = vmatmul.bf16.gmra.mxu0 %v353
      %v478 = vpop.f32.mrf.mxu0
      %v479 = vadd.f32 %v278, %v478
      %v480 = vpop.f32.mrf.mxu0
      %v481 = vadd.f32 %v278, %v480
      %482 = vmatmul.bf16.gmra.mxu0 %v354
      %v483 = vpop.f32.mrf.mxu0
      %v484 = vadd.f32 %v278, %v483
      %v485 = vpop.f32.mrf.mxu0
      %v486 = vadd.f32 %v278, %v485
      %487 = vmatmul.bf16.gmra.mxu0 %v355
      %v488 = vpop.f32.mrf.mxu0
      %v489 = vadd.f32 %v278, %v488
      %v490 = vpop.f32.mrf.mxu0
      %v491 = vadd.f32 %v278, %v490
      %492 = vmatmul.bf16.gmra.mxu0 %v356
      %v493 = vpop.f32.mrf.mxu0
      %v494 = vadd.f32 %v278, %v493
      %v495 = vpop.f32.mrf.mxu0
      %v496 = vadd.f32 %v278, %v495
      %497 = vmatmul.bf16.gmra.mxu0 %v357
      %v498 = vpop.f32.mrf.mxu0
      %v499 = vadd.f32 %v278, %v498
      %v500 = vpop.f32.mrf.mxu0
      %v501 = vadd.f32 %v278, %v500
      %502 = vmatmul.bf16.gmra.mxu0 %v358
      %v503 = vpop.f32.mrf.mxu0
      %v504 = vadd.f32 %v278, %v503
      %v505 = vpop.f32.mrf.mxu0
      %v506 = vadd.f32 %v278, %v505
      %507 = vmatmul.bf16.gmra.mxu0 %v359
      %v508 = vpop.f32.mrf.mxu0
      %v509 = vadd.f32 %v278, %v508
      %v510 = vpop.f32.mrf.mxu0
      %v511 = vadd.f32 %v278, %v510
      %512 = vdwg.mxu0
      %v513 = vmul.f32 %v434, 0.5
      %v514 = vmul.f32 %v436, 0.5
      %v515 = vmul.f32 %v439, 0.5
      %v516 = vmul.f32 %v441, 0.5
      %v517 = vmul.f32 %v444, 0.5
      %v518 = vmul.f32 %v446, 0.5
      %v519 = vmul.f32 %v449, 0.5
      %v520 = vmul.f32 %v451, 0.5
      %v521 = vmul.f32 %v454, 0.5
      %v522 = vmul.f32 %v456, 0.5
      %v523 = vmul.f32 %v459, 0.5
      %v524 = vmul.f32 %v461, 0.5
      %v525 = vmul.f32 %v464, 0.5
      %v526 = vmul.f32 %v466, 0.5
      %v527 = vmul.f32 %v469, 0.5
      %v528 = vmul.f32 %v471, 0.5
      %v529 = vmul.f32 %v474, 0.5
      %v530 = vmul.f32 %v476, 0.5
      %v531 = vmul.f32 %v479, 0.5
      %v532 = vmul.f32 %v481, 0.5
      %v533 = vmul.f32 %v484, 0.5
      %v534 = vmul.f32 %v486, 0.5
      %v535 = vmul.f32 %v489, 0.5
      %v536 = vmul.f32 %v491, 0.5
      %v537 = vmul.f32 %v494, 0.5
      %v538 = vmul.f32 %v496, 0.5
      %v539 = vmul.f32 %v499, 0.5
      %v540 = vmul.f32 %v501, 0.5
      %v541 = vmul.f32 %v504, 0.5
      %v542 = vmul.f32 %v506, 0.5
      %v543 = vmul.f32 %v509, 0.5
      %v544 = vmul.f32 %v511, 0.5
      %v545 = vmul.f32 %v434, 0.70710677
      %v546 = vmul.f32 %v436, 0.70710677
      %v547 = vmul.f32 %v439, 0.70710677
      %v548 = vmul.f32 %v441, 0.70710677
      %v549 = vmul.f32 %v444, 0.70710677
      %v550 = vmul.f32 %v446, 0.70710677
      %v551 = vmul.f32 %v449, 0.70710677
      %v552 = vmul.f32 %v451, 0.70710677
      %v553 = vmul.f32 %v454, 0.70710677
      %v554 = vmul.f32 %v456, 0.70710677
      %v555 = vmul.f32 %v459, 0.70710677
      %v556 = vmul.f32 %v461, 0.70710677
      %v557 = vmul.f32 %v464, 0.70710677
      %v558 = vmul.f32 %v466, 0.70710677
      %v559 = vmul.f32 %v469, 0.70710677
      %v560 = vmul.f32 %v471, 0.70710677
      %v561 = vmul.f32 %v474, 0.70710677
      %v562 = vmul.f32 %v476, 0.70710677
      %v563 = vmul.f32 %v479, 0.70710677
      %v564 = vmul.f32 %v481, 0.70710677
      %v565 = vmul.f32 %v484, 0.70710677
      %v566 = vmul.f32 %v486, 0.70710677
      %v567 = vmul.f32 %v489, 0.70710677
      %v568 = vmul.f32 %v491, 0.70710677
      %v569 = vmul.f32 %v494, 0.70710677
      %v570 = vmul.f32 %v496, 0.70710677
      %v571 = vmul.f32 %v499, 0.70710677
      %v572 = vmul.f32 %v501, 0.70710677
      %v573 = vmul.f32 %v504, 0.70710677
      %v574 = vmul.f32 %v506, 0.70710677
      %v575 = vmul.f32 %v509, 0.70710677
      %v576 = vmul.f32 %v511, 0.70710677
      %v577 = vmul.f32 %v545, %v545
      %v578 = vmin.f32 16.0, %v577
      %v579 = vmul.f32 %v578, 2.1237322e-06
      %v580 = vadd.f32 %v579, 0.00028619796
      %v581 = vmul.f32 %v578, %v580
      %v582 = vadd.f32 %v581, 0.0036580483
      %v583 = vmul.f32 %v578, %v582
      %v584 = vadd.f32 %v583, 0.05243302
      %v585 = vmul.f32 %v578, %v584
      %v586 = vadd.f32 %v585, 0.18741608
      %v587 = vmul.f32 %v578, %v586
      %v588 = vadd.f32 %v587, 1.1283791
      %v589 = vmul.f32 %v545, %v588
      %v590 = vmul.f32 %v578, 3.8918573e-05
      %v591 = vadd.f32 %v590, 0.001143296
      %v592 = vmul.f32 %v578, %v591
      %v593 = vadd.f32 %v592, 0.014752088
      %v594 = vmul.f32 %v578, %v593
      %v595 = vadd.f32 %v594, 0.112945676
      %v596 = vmul.f32 %v578, %v595
      %v597 = vadd.f32 %v596, 0.4994258
      %v598 = vmul.f32 %v578, %v597
      %v599 = vadd.f32 %v598, 1.0
      %v600 = vrcp.pop %v599
      %v601 = vmul.f32 %v599, %v600
      %v602 = vsub.f32 1.0, %v601
      %v603 = vmul.f32 %v600, %v602
      %v604 = vadd.f32 %v600, %v603
      %vm605 = vweird.f32 %v599
      %vm606 = vweird.f32 %v600
      %vm607 = vmor %vm605, %vm606
      %v608 = vsel %vm607, %v600, %v604
      %v609 = vand.u32 2147483647, %v599
      %vm610 = vcmp.eq.f32.partialorder %v609, 8.507059e+37
      %v611 = vand.u32 %v599, 2147483648
      %v612 = vor.u32 1.1754944e-38, %v611
      %v613 = vsel %vm610, %v612, %v608
      %v614 = vmul.f32 %v589, %v613
      %v615 = vmin.f32 %v614, 1.0
      %v616 = vmax.f32 %v615, -1.0
      %v617 = vmul.f32 %v546, %v546
      %v618 = vmin.f32 16.0, %v617
      %v619 = vmul.f32 %v618, 2.1237322e-06
      %v620 = vadd.f32 %v619, 0.00028619796
      %v621 = vmul.f32 %v618, %v620
      %v622 = vadd.f32 %v621, 0.0036580483
      %v623 = vmul.f32 %v618, %v622
      %v624 = vadd.f32 %v623, 0.05243302
      %v625 = vmul.f32 %v618, %v624
      %v626 = vadd.f32 %v625, 0.18741608
      %v627 = vmul.f32 %v618, %v626
      %v628 = vadd.f32 %v627, 1.1283791
      %v629 = vmul.f32 %v546, %v628
      %v630 = vmul.f32 %v618, 3.8918573e-05
      %v631 = vadd.f32 %v630, 0.001143296
      %v632 = vmul.f32 %v618, %v631
      %v633 = vadd.f32 %v632, 0.014752088
      %v634 = vmul.f32 %v618, %v633
      %v635 = vadd.f32 %v634, 0.112945676
      %v636 = vmul.f32 %v618, %v635
      %v637 = vadd.f32 %v636, 0.4994258
      %v638 = vmul.f32 %v618, %v637
      %v639 = vadd.f32 %v638, 1.0
      %v640 = vrcp.pop %v639
      %v641 = vmul.f32 %v639, %v640
      %v642 = vsub.f32 1.0, %v641
      %v643 = vmul.f32 %v640, %v642
      %v644 = vadd.f32 %v640, %v643
      %vm645 = vweird.f32 %v639
      %vm646 = vweird.f32 %v640
      %vm647 = vmor %vm645, %vm646
      %v648 = vsel %vm647, %v640, %v644
      %v649 = vand.u32 2147483647, %v639
      %vm650 = vcmp.eq.f32.partialorder %v649, 8.507059e+37
      %v651 = vand.u32 %v639, 2147483648
      %v652 = vor.u32 1.1754944e-38, %v651
      %v653 = vsel %vm650, %v652, %v648
      %v654 = vmul.f32 %v629, %v653
      %v655 = vmin.f32 %v654, 1.0
      %v656 = vmax.f32 %v655, -1.0
      %v657 = vmul.f32 %v547, %v547
      %v658 = vmin.f32 16.0, %v657
      %v659 = vmul.f32 %v658, 2.1237322e-06
      %v660 = vadd.f32 %v659, 0.00028619796
      %v661 = vmul.f32 %v658, %v660
      %v662 = vadd.f32 %v661, 0.0036580483
      %v663 = vmul.f32 %v658, %v662
      %v664 = vadd.f32 %v663, 0.05243302
      %v665 = vmul.f32 %v658, %v664
      %v666 = vadd.f32 %v665, 0.18741608
      %v667 = vmul.f32 %v658, %v666
      %v668 = vadd.f32 %v667, 1.1283791
      %v669 = vmul.f32 %v547, %v668
      %v670 = vmul.f32 %v658, 3.8918573e-05
      %v671 = vadd.f32 %v670, 0.001143296
      %v672 = vmul.f32 %v658, %v671
      %v673 = vadd.f32 %v672, 0.014752088
      %v674 = vmul.f32 %v658, %v673
      %v675 = vadd.f32 %v674, 0.112945676
      %v676 = vmul.f32 %v658, %v675
      %v677 = vadd.f32 %v676, 0.4994258
      %v678 = vmul.f32 %v658, %v677
      %v679 = vadd.f32 %v678, 1.0
      %v680 = vrcp.pop %v679
      %v681 = vmul.f32 %v679, %v680
      %v682 = vsub.f32 1.0, %v681
      %v683 = vmul.f32 %v680, %v682
      %v684 = vadd.f32 %v680, %v683
      %vm685 = vweird.f32 %v679
      %vm686 = vweird.f32 %v680
      %vm687 = vmor %vm685, %vm686
      %v688 = vsel %vm687, %v680, %v684
      %v689 = vand.u32 2147483647, %v679
      %vm690 = vcmp.eq.f32.partialorder %v689, 8.507059e+37
      %v691 = vand.u32 %v679, 2147483648
      %v692 = vor.u32 1.1754944e-38, %v691
      %v693 = vsel %vm690, %v692, %v688
      %v694 = vmul.f32 %v669, %v693
      %v695 = vmin.f32 %v694, 1.0
      %v696 = vmax.f32 %v695, -1.0
      %v697 = vmul.f32 %v548, %v548
      %v698 = vmin.f32 16.0, %v697
      %v699 = vmul.f32 %v698, 2.1237322e-06
      %v700 = vadd.f32 %v699, 0.00028619796
      %v701 = vmul.f32 %v698, %v700
      %v702 = vadd.f32 %v701, 0.0036580483
      %v703 = vmul.f32 %v698, %v702
      %v704 = vadd.f32 %v703, 0.05243302
      %v705 = vmul.f32 %v698, %v704
      %v706 = vadd.f32 %v705, 0.18741608
      %v707 = vmul.f32 %v698, %v706
      %v708 = vadd.f32 %v707, 1.1283791
      %v709 = vmul.f32 %v548, %v708
      %v710 = vmul.f32 %v698, 3.8918573e-05
      %v711 = vadd.f32 %v710, 0.001143296
      %v712 = vmul.f32 %v698, %v711
      %v713 = vadd.f32 %v712, 0.014752088
      %v714 = vmul.f32 %v698, %v713
      %v715 = vadd.f32 %v714, 0.112945676
      %v716 = vmul.f32 %v698, %v715
      %v717 = vadd.f32 %v716, 0.4994258
      %v718 = vmul.f32 %v698, %v717
      %v719 = vadd.f32 %v718, 1.0
      %v720 = vrcp.pop %v719
      %v721 = vmul.f32 %v719, %v720
      %v722 = vsub.f32 1.0, %v721
      %v723 = vmul.f32 %v720, %v722
      %v724 = vadd.f32 %v720, %v723
      %vm725 = vweird.f32 %v719
      %vm726 = vweird.f32 %v720
      %vm727 = vmor %vm725, %vm726
      %v728 = vsel %vm727, %v720, %v724
      %v729 = vand.u32 2147483647, %v719
      %vm730 = vcmp.eq.f32.partialorder %v729, 8.507059e+37
      %v731 = vand.u32 %v719, 2147483648
      %v732 = vor.u32 1.1754944e-38, %v731
      %v733 = vsel %vm730, %v732, %v728
      %v734 = vmul.f32 %v709, %v733
      %v735 = vmin.f32 %v734, 1.0
      %v736 = vmax.f32 %v735, -1.0
      %v737 = vmul.f32 %v549, %v549
      %v738 = vmin.f32 16.0, %v737
      %v739 = vmul.f32 %v738, 2.1237322e-06
      %v740 = vadd.f32 %v739, 0.00028619796
      %v741 = vmul.f32 %v738, %v740
      %v742 = vadd.f32 %v741, 0.0036580483
      %v743 = vmul.f32 %v738, %v742
      %v744 = vadd.f32 %v743, 0.05243302
      %v745 = vmul.f32 %v738, %v744
      %v746 = vadd.f32 %v745, 0.18741608
      %v747 = vmul.f32 %v738, %v746
      %v748 = vadd.f32 %v747, 1.1283791
      %v749 = vmul.f32 %v549, %v748
      %v750 = vmul.f32 %v738, 3.8918573e-05
      %v751 = vadd.f32 %v750, 0.001143296
      %v752 = vmul.f32 %v738, %v751
      %v753 = vadd.f32 %v752, 0.014752088
      %v754 = vmul.f32 %v738, %v753
      %v755 = vadd.f32 %v754, 0.112945676
      %v756 = vmul.f32 %v738, %v755
      %v757 = vadd.f32 %v756, 0.4994258
      %v758 = vmul.f32 %v738, %v757
      %v759 = vadd.f32 %v758, 1.0
      %v760 = vrcp.pop %v759
      %v761 = vmul.f32 %v759, %v760
      %v762 = vsub.f32 1.0, %v761
      %v763 = vmul.f32 %v760, %v762
      %v764 = vadd.f32 %v760, %v763
      %vm765 = vweird.f32 %v759
      %vm766 = vweird.f32 %v760
      %vm767 = vmor %vm765, %vm766
      %v768 = vsel %vm767, %v760, %v764
      %v769 = vand.u32 2147483647, %v759
      %vm770 = vcmp.eq.f32.partialorder %v769, 8.507059e+37
      %v771 = vand.u32 %v759, 2147483648
      %v772 = vor.u32 1.1754944e-38, %v771
      %v773 = vsel %vm770, %v772, %v768
      %v774 = vmul.f32 %v749, %v773
      %v775 = vmin.f32 %v774, 1.0
      %v776 = vmax.f32 %v775, -1.0
      %v777 = vmul.f32 %v550, %v550
      %v778 = vmin.f32 16.0, %v777
      %v779 = vmul.f32 %v778, 2.1237322e-06
      %v780 = vadd.f32 %v779, 0.00028619796
      %v781 = vmul.f32 %v778, %v780
      %v782 = vadd.f32 %v781, 0.0036580483
      %v783 = vmul.f32 %v778, %v782
      %v784 = vadd.f32 %v783, 0.05243302
      %v785 = vmul.f32 %v778, %v784
      %v786 = vadd.f32 %v785, 0.18741608
      %v787 = vmul.f32 %v778, %v786
      %v788 = vadd.f32 %v787, 1.1283791
      %v789 = vmul.f32 %v550, %v788
      %v790 = vmul.f32 %v778, 3.8918573e-05
      %v791 = vadd.f32 %v790, 0.001143296
      %v792 = vmul.f32 %v778, %v791
      %v793 = vadd.f32 %v792, 0.014752088
      %v794 = vmul.f32 %v778, %v793
      %v795 = vadd.f32 %v794, 0.112945676
      %v796 = vmul.f32 %v778, %v795
      %v797 = vadd.f32 %v796, 0.4994258
      %v798 = vmul.f32 %v778, %v797
      %v799 = vadd.f32 %v798, 1.0
      %v800 = vrcp.pop %v799
      %v801 = vmul.f32 %v799, %v800
      %v802 = vsub.f32 1.0, %v801
      %v803 = vmul.f32 %v800, %v802
      %v804 = vadd.f32 %v800, %v803
      %vm805 = vweird.f32 %v799
      %vm806 = vweird.f32 %v800
      %vm807 = vmor %vm805, %vm806
      %v808 = vsel %vm807, %v800, %v804
      %v809 = vand.u32 2147483647, %v799
      %vm810 = vcmp.eq.f32.partialorder %v809, 8.507059e+37
      %v811 = vand.u32 %v799, 2147483648
      %v812 = vor.u32 1.1754944e-38, %v811
      %v813 = vsel %vm810, %v812, %v808
      %v814 = vmul.f32 %v789, %v813
      %v815 = vmin.f32 %v814, 1.0
      %v816 = vmax.f32 %v815, -1.0
      %v817 = vmul.f32 %v551, %v551
      %v818 = vmin.f32 16.0, %v817
      %v819 = vmul.f32 %v818, 2.1237322e-06
      %v820 = vadd.f32 %v819, 0.00028619796
      %v821 = vmul.f32 %v818, %v820
      %v822 = vadd.f32 %v821, 0.0036580483
      %v823 = vmul.f32 %v818, %v822
      %v824 = vadd.f32 %v823, 0.05243302
      %v825 = vmul.f32 %v818, %v824
      %v826 = vadd.f32 %v825, 0.18741608
      %v827 = vmul.f32 %v818, %v826
      %v828 = vadd.f32 %v827, 1.1283791
      %v829 = vmul.f32 %v551, %v828
      %v830 = vmul.f32 %v818, 3.8918573e-05
      %v831 = vadd.f32 %v830, 0.001143296
      %v832 = vmul.f32 %v818, %v831
      %v833 = vadd.f32 %v832, 0.014752088
      %v834 = vmul.f32 %v818, %v833
      %v835 = vadd.f32 %v834, 0.112945676
      %v836 = vmul.f32 %v818, %v835
      %v837 = vadd.f32 %v836, 0.4994258
      %v838 = vmul.f32 %v818, %v837
      %v839 = vadd.f32 %v838, 1.0
      %v840 = vrcp.pop %v839
      %v841 = vmul.f32 %v839, %v840
      %v842 = vsub.f32 1.0, %v841
      %v843 = vmul.f32 %v840, %v842
      %v844 = vadd.f32 %v840, %v843
      %vm845 = vweird.f32 %v839
      %vm846 = vweird.f32 %v840
      %vm847 = vmor %vm845, %vm846
      %v848 = vsel %vm847, %v840, %v844
      %v849 = vand.u32 2147483647, %v839
      %vm850 = vcmp.eq.f32.partialorder %v849, 8.507059e+37
      %v851 = vand.u32 %v839, 2147483648
      %v852 = vor.u32 1.1754944e-38, %v851
      %v853 = vsel %vm850, %v852, %v848
      %v854 = vmul.f32 %v829, %v853
      %v855 = vmin.f32 %v854, 1.0
      %v856 = vmax.f32 %v855, -1.0
      %v857 = vmul.f32 %v552, %v552
      %v858 = vmin.f32 16.0, %v857
      %v859 = vmul.f32 %v858, 2.1237322e-06
      %v860 = vadd.f32 %v859, 0.00028619796
      %v861 = vmul.f32 %v858, %v860
      %v862 = vadd.f32 %v861, 0.0036580483
      %v863 = vmul.f32 %v858, %v862
      %v864 = vadd.f32 %v863, 0.05243302
      %v865 = vmul.f32 %v858, %v864
      %v866 = vadd.f32 %v865, 0.18741608
      %v867 = vmul.f32 %v858, %v866
      %v868 = vadd.f32 %v867, 1.1283791
      %v869 = vmul.f32 %v552, %v868
      %v870 = vmul.f32 %v858, 3.8918573e-05
      %v871 = vadd.f32 %v870, 0.001143296
      %v872 = vmul.f32 %v858, %v871
      %v873 = vadd.f32 %v872, 0.014752088
      %v874 = vmul.f32 %v858, %v873
      %v875 = vadd.f32 %v874, 0.112945676
      %v876 = vmul.f32 %v858, %v875
      %v877 = vadd.f32 %v876, 0.4994258
      %v878 = vmul.f32 %v858, %v877
      %v879 = vadd.f32 %v878, 1.0
      %v880 = vrcp.pop %v879
      %v881 = vmul.f32 %v879, %v880
      %v882 = vsub.f32 1.0, %v881
      %v883 = vmul.f32 %v880, %v882
      %v884 = vadd.f32 %v880, %v883
      %vm885 = vweird.f32 %v879
      %vm886 = vweird.f32 %v880
      %vm887 = vmor %vm885, %vm886
      %v888 = vsel %vm887, %v880, %v884
      %v889 = vand.u32 2147483647, %v879
      %vm890 = vcmp.eq.f32.partialorder %v889, 8.507059e+37
      %v891 = vand.u32 %v879, 2147483648
      %v892 = vor.u32 1.1754944e-38, %v891
      %v893 = vsel %vm890, %v892, %v888
      %v894 = vmul.f32 %v869, %v893
      %v895 = vmin.f32 %v894, 1.0
      %v896 = vmax.f32 %v895, -1.0
      %v897 = vmul.f32 %v553, %v553
      %v898 = vmin.f32 16.0, %v897
      %v899 = vmul.f32 %v898, 2.1237322e-06
      %v900 = vadd.f32 %v899, 0.00028619796
      %v901 = vmul.f32 %v898, %v900
      %v902 = vadd.f32 %v901, 0.0036580483
      %v903 = vmul.f32 %v898, %v902
      %v904 = vadd.f32 %v903, 0.05243302
      %v905 = vmul.f32 %v898, %v904
      %v906 = vadd.f32 %v905, 0.18741608
      %v907 = vmul.f32 %v898, %v906
      %v908 = vadd.f32 %v907, 1.1283791
      %v909 = vmul.f32 %v553, %v908
      %v910 = vmul.f32 %v898, 3.8918573e-05
      %v911 = vadd.f32 %v910, 0.001143296
      %v912 = vmul.f32 %v898, %v911
      %v913 = vadd.f32 %v912, 0.014752088
      %v914 = vmul.f32 %v898, %v913
      %v915 = vadd.f32 %v914, 0.112945676
      %v916 = vmul.f32 %v898, %v915
      %v917 = vadd.f32 %v916, 0.4994258
      %v918 = vmul.f32 %v898, %v917
      %v919 = vadd.f32 %v918, 1.0
      %v920 = vrcp.pop %v919
      %v921 = vmul.f32 %v919, %v920
      %v922 = vsub.f32 1.0, %v921
      %v923 = vmul.f32 %v920, %v922
      %v924 = vadd.f32 %v920, %v923
      %vm925 = vweird.f32 %v919
      %vm926 = vweird.f32 %v920
      %vm927 = vmor %vm925, %vm926
      %v928 = vsel %vm927, %v920, %v924
      %v929 = vand.u32 2147483647, %v919
      %vm930 = vcmp.eq.f32.partialorder %v929, 8.507059e+37
      %v931 = vand.u32 %v919, 2147483648
      %v932 = vor.u32 1.1754944e-38, %v931
      %v933 = vsel %vm930, %v932, %v928
      %v934 = vmul.f32 %v909, %v933
      %v935 = vmin.f32 %v934, 1.0
      %v936 = vmax.f32 %v935, -1.0
      %v937 = vmul.f32 %v554, %v554
      %v938 = vmin.f32 16.0, %v937
      %v939 = vmul.f32 %v938, 2.1237322e-06
      %v940 = vadd.f32 %v939, 0.00028619796
      %v941 = vmul.f32 %v938, %v940
      %v942 = vadd.f32 %v941, 0.0036580483
      %v943 = vmul.f32 %v938, %v942
      %v944 = vadd.f32 %v943, 0.05243302
      %v945 = vmul.f32 %v938, %v944
      %v946 = vadd.f32 %v945, 0.18741608
      %v947 = vmul.f32 %v938, %v946
      %v948 = vadd.f32 %v947, 1.1283791
      %v949 = vmul.f32 %v554, %v948
      %v950 = vmul.f32 %v938, 3.8918573e-05
      %v951 = vadd.f32 %v950, 0.001143296
      %v952 = vmul.f32 %v938, %v951
      %v953 = vadd.f32 %v952, 0.014752088
      %v954 = vmul.f32 %v938, %v953
      %v955 = vadd.f32 %v954, 0.112945676
      %v956 = vmul.f32 %v938, %v955
      %v957 = vadd.f32 %v956, 0.4994258
      %v958 = vmul.f32 %v938, %v957
      %v959 = vadd.f32 %v958, 1.0
      %v960 = vrcp.pop %v959
      %v961 = vmul.f32 %v959, %v960
      %v962 = vsub.f32 1.0, %v961
      %v963 = vmul.f32 %v960, %v962
      %v964 = vadd.f32 %v960, %v963
      %vm965 = vweird.f32 %v959
      %vm966 = vweird.f32 %v960
      %vm967 = vmor %vm965, %vm966
      %v968 = vsel %vm967, %v960, %v964
      %v969 = vand.u32 2147483647, %v959
      %vm970 = vcmp.eq.f32.partialorder %v969, 8.507059e+37
      %v971 = vand.u32 %v959, 2147483648
      %v972 = vor.u32 1.1754944e-38, %v971
      %v973 = vsel %vm970, %v972, %v968
      %v974 = vmul.f32 %v949, %v973
      %v975 = vmin.f32 %v974, 1.0
      %v976 = vmax.f32 %v975, -1.0
      %v977 = vmul.f32 %v555, %v555
      %v978 = vmin.f32 16.0, %v977
      %v979 = vmul.f32 %v978, 2.1237322e-06
      %v980 = vadd.f32 %v979, 0.00028619796
      %v981 = vmul.f32 %v978, %v980
      %v982 = vadd.f32 %v981, 0.0036580483
      %v983 = vmul.f32 %v978, %v982
      %v984 = vadd.f32 %v983, 0.05243302
      %v985 = vmul.f32 %v978, %v984
      %v986 = vadd.f32 %v985, 0.18741608
      %v987 = vmul.f32 %v978, %v986
      %v988 = vadd.f32 %v987, 1.1283791
      %v989 = vmul.f32 %v555, %v988
      %v990 = vmul.f32 %v978, 3.8918573e-05
      %v991 = vadd.f32 %v990, 0.001143296
      %v992 = vmul.f32 %v978, %v991
      %v993 = vadd.f32 %v992, 0.014752088
      %v994 = vmul.f32 %v978, %v993
      %v995 = vadd.f32 %v994, 0.112945676
      %v996 = vmul.f32 %v978, %v995
      %v997 = vadd.f32 %v996, 0.4994258
      %v998 = vmul.f32 %v978, %v997
      %v999 = vadd.f32 %v998, 1.0
      %v1000 = vrcp.pop %v999
      %v1001 = vmul.f32 %v999, %v1000
      %v1002 = vsub.f32 1.0, %v1001
      %v1003 = vmul.f32 %v1000, %v1002
      %v1004 = vadd.f32 %v1000, %v1003
      %vm1005 = vweird.f32 %v999
      %vm1006 = vweird.f32 %v1000
      %vm1007 = vmor %vm1005, %vm1006
      %v1008 = vsel %vm1007, %v1000, %v1004
      %v1009 = vand.u32 2147483647, %v999
      %vm1010 = vcmp.eq.f32.partialorder %v1009, 8.507059e+37
      %v1011 = vand.u32 %v999, 2147483648
      %v1012 = vor.u32 1.1754944e-38, %v1011
      %v1013 = vsel %vm1010, %v1012, %v1008
      %v1014 = vmul.f32 %v989, %v1013
      %v1015 = vmin.f32 %v1014, 1.0
      %v1016 = vmax.f32 %v1015, -1.0
      %v1017 = vmul.f32 %v556, %v556
      %v1018 = vmin.f32 16.0, %v1017
      %v1019 = vmul.f32 %v1018, 2.1237322e-06
      %v1020 = vadd.f32 %v1019, 0.00028619796
      %v1021 = vmul.f32 %v1018, %v1020
      %v1022 = vadd.f32 %v1021, 0.0036580483
      %v1023 = vmul.f32 %v1018, %v1022
      %v1024 = vadd.f32 %v1023, 0.05243302
      %v1025 = vmul.f32 %v1018, %v1024
      %v1026 = vadd.f32 %v1025, 0.18741608
      %v1027 = vmul.f32 %v1018, %v1026
      %v1028 = vadd.f32 %v1027, 1.1283791
      %v1029 = vmul.f32 %v556, %v1028
      %v1030 = vmul.f32 %v1018, 3.8918573e-05
      %v1031 = vadd.f32 %v1030, 0.001143296
      %v1032 = vmul.f32 %v1018, %v1031
      %v1033 = vadd.f32 %v1032, 0.014752088
      %v1034 = vmul.f32 %v1018, %v1033
      %v1035 = vadd.f32 %v1034, 0.112945676
      %v1036 = vmul.f32 %v1018, %v1035
      %v1037 = vadd.f32 %v1036, 0.4994258
      %v1038 = vmul.f32 %v1018, %v1037
      %v1039 = vadd.f32 %v1038, 1.0
      %v1040 = vrcp.pop %v1039
      %v1041 = vmul.f32 %v1039, %v1040
      %v1042 = vsub.f32 1.0, %v1041
      %v1043 = vmul.f32 %v1040, %v1042
      %v1044 = vadd.f32 %v1040, %v1043
      %vm1045 = vweird.f32 %v1039
      %vm1046 = vweird.f32 %v1040
      %vm1047 = vmor %vm1045, %vm1046
      %v1048 = vsel %vm1047, %v1040, %v1044
      %v1049 = vand.u32 2147483647, %v1039
      %vm1050 = vcmp.eq.f32.partialorder %v1049, 8.507059e+37
      %v1051 = vand.u32 %v1039, 2147483648
      %v1052 = vor.u32 1.1754944e-38, %v1051
      %v1053 = vsel %vm1050, %v1052, %v1048
      %v1054 = vmul.f32 %v1029, %v1053
      %v1055 = vmin.f32 %v1054, 1.0
      %v1056 = vmax.f32 %v1055, -1.0
      %v1057 = vmul.f32 %v557, %v557
      %v1058 = vmin.f32 16.0, %v1057
      %v1059 = vmul.f32 %v1058, 2.1237322e-06
      %v1060 = vadd.f32 %v1059, 0.00028619796
      %v1061 = vmul.f32 %v1058, %v1060
      %v1062 = vadd.f32 %v1061, 0.0036580483
      %v1063 = vmul.f32 %v1058, %v1062
      %v1064 = vadd.f32 %v1063, 0.05243302
      %v1065 = vmul.f32 %v1058, %v1064
      %v1066 = vadd.f32 %v1065, 0.18741608
      %v1067 = vmul.f32 %v1058, %v1066
      %v1068 = vadd.f32 %v1067, 1.1283791
      %v1069 = vmul.f32 %v557, %v1068
      %v1070 = vmul.f32 %v1058, 3.8918573e-05
      %v1071 = vadd.f32 %v1070, 0.001143296
      %v1072 = vmul.f32 %v1058, %v1071
      %v1073 = vadd.f32 %v1072, 0.014752088
      %v1074 = vmul.f32 %v1058, %v1073
      %v1075 = vadd.f32 %v1074, 0.112945676
      %v1076 = vmul.f32 %v1058, %v1075
      %v1077 = vadd.f32 %v1076, 0.4994258
      %v1078 = vmul.f32 %v1058, %v1077
      %v1079 = vadd.f32 %v1078, 1.0
      %v1080 = vrcp.pop %v1079
      %v1081 = vmul.f32 %v1079, %v1080
      %v1082 = vsub.f32 1.0, %v1081
      %v1083 = vmul.f32 %v1080, %v1082
      %v1084 = vadd.f32 %v1080, %v1083
      %vm1085 = vweird.f32 %v1079
      %vm1086 = vweird.f32 %v1080
      %vm1087 = vmor %vm1085, %vm1086
      %v1088 = vsel %vm1087, %v1080, %v1084
      %v1089 = vand.u32 2147483647, %v1079
      %vm1090 = vcmp.eq.f32.partialorder %v1089, 8.507059e+37
      %v1091 = vand.u32 %v1079, 2147483648
      %v1092 = vor.u32 1.1754944e-38, %v1091
      %v1093 = vsel %vm1090, %v1092, %v1088
      %v1094 = vmul.f32 %v1069, %v1093
      %v1095 = vmin.f32 %v1094, 1.0
      %v1096 = vmax.f32 %v1095, -1.0
      %v1097 = vmul.f32 %v558, %v558
      %v1098 = vmin.f32 16.0, %v1097
      %v1099 = vmul.f32 %v1098, 2.1237322e-06
      %v1100 = vadd.f32 %v1099, 0.00028619796
      %v1101 = vmul.f32 %v1098, %v1100
      %v1102 = vadd.f32 %v1101, 0.0036580483
      %v1103 = vmul.f32 %v1098, %v1102
      %v1104 = vadd.f32 %v1103, 0.05243302
      %v1105 = vmul.f32 %v1098, %v1104
      %v1106 = vadd.f32 %v1105, 0.18741608
      %v1107 = vmul.f32 %v1098, %v1106
      %v1108 = vadd.f32 %v1107, 1.1283791
      %v1109 = vmul.f32 %v558, %v1108
      %v1110 = vmul.f32 %v1098, 3.8918573e-05
      %v1111 = vadd.f32 %v1110, 0.001143296
      %v1112 = vmul.f32 %v1098, %v1111
      %v1113 = vadd.f32 %v1112, 0.014752088
      %v1114 = vmul.f32 %v1098, %v1113
      %v1115 = vadd.f32 %v1114, 0.112945676
      %v1116 = vmul.f32 %v1098, %v1115
      %v1117 = vadd.f32 %v1116, 0.4994258
      %v1118 = vmul.f32 %v1098, %v1117
      %v1119 = vadd.f32 %v1118, 1.0
      %v1120 = vrcp.pop %v1119
      %v1121 = vmul.f32 %v1119, %v1120
      %v1122 = vsub.f32 1.0, %v1121
      %v1123 = vmul.f32 %v1120, %v1122
      %v1124 = vadd.f32 %v1120, %v1123
      %vm1125 = vweird.f32 %v1119
      %vm1126 = vweird.f32 %v1120
      %vm1127 = vmor %vm1125, %vm1126
      %v1128 = vsel %vm1127, %v1120, %v1124
      %v1129 = vand.u32 2147483647, %v1119
      %vm1130 = vcmp.eq.f32.partialorder %v1129, 8.507059e+37
      %v1131 = vand.u32 %v1119, 2147483648
      %v1132 = vor.u32 1.1754944e-38, %v1131
      %v1133 = vsel %vm1130, %v1132, %v1128
      %v1134 = vmul.f32 %v1109, %v1133
      %v1135 = vmin.f32 %v1134, 1.0
      %v1136 = vmax.f32 %v1135, -1.0
      %v1137 = vmul.f32 %v559, %v559
      %v1138 = vmin.f32 16.0, %v1137
      %v1139 = vmul.f32 %v1138, 2.1237322e-06
      %v1140 = vadd.f32 %v1139, 0.00028619796
      %v1141 = vmul.f32 %v1138, %v1140
      %v1142 = vadd.f32 %v1141, 0.0036580483
      %v1143 = vmul.f32 %v1138, %v1142
      %v1144 = vadd.f32 %v1143, 0.05243302
      %v1145 = vmul.f32 %v1138, %v1144
      %v1146 = vadd.f32 %v1145, 0.18741608
      %v1147 = vmul.f32 %v1138, %v1146
      %v1148 = vadd.f32 %v1147, 1.1283791
      %v1149 = vmul.f32 %v559, %v1148
      %v1150 = vmul.f32 %v1138, 3.8918573e-05
      %v1151 = vadd.f32 %v1150, 0.001143296
      %v1152 = vmul.f32 %v1138, %v1151
      %v1153 = vadd.f32 %v1152, 0.014752088
      %v1154 = vmul.f32 %v1138, %v1153
      %v1155 = vadd.f32 %v1154, 0.112945676
      %v1156 = vmul.f32 %v1138, %v1155
      %v1157 = vadd.f32 %v1156, 0.4994258
      %v1158 = vmul.f32 %v1138, %v1157
      %v1159 = vadd.f32 %v1158, 1.0
      %v1160 = vrcp.pop %v1159
      %v1161 = vmul.f32 %v1159, %v1160
      %v1162 = vsub.f32 1.0, %v1161
      %v1163 = vmul.f32 %v1160, %v1162
      %v1164 = vadd.f32 %v1160, %v1163
      %vm1165 = vweird.f32 %v1159
      %vm1166 = vweird.f32 %v1160
      %vm1167 = vmor %vm1165, %vm1166
      %v1168 = vsel %vm1167, %v1160, %v1164
      %v1169 = vand.u32 2147483647, %v1159
      %vm1170 = vcmp.eq.f32.partialorder %v1169, 8.507059e+37
      %v1171 = vand.u32 %v1159, 2147483648
      %v1172 = vor.u32 1.1754944e-38, %v1171
      %v1173 = vsel %vm1170, %v1172, %v1168
      %v1174 = vmul.f32 %v1149, %v1173
      %v1175 = vmin.f32 %v1174, 1.0
      %v1176 = vmax.f32 %v1175, -1.0
      %v1177 = vmul.f32 %v560, %v560
      %v1178 = vmin.f32 16.0, %v1177
      %v1179 = vmul.f32 %v1178, 2.1237322e-06
      %v1180 = vadd.f32 %v1179, 0.00028619796
      %v1181 = vmul.f32 %v1178, %v1180
      %v1182 = vadd.f32 %v1181, 0.0036580483
      %v1183 = vmul.f32 %v1178, %v1182
      %v1184 = vadd.f32 %v1183, 0.05243302
      %v1185 = vmul.f32 %v1178, %v1184
      %v1186 = vadd.f32 %v1185, 0.18741608
      %v1187 = vmul.f32 %v1178, %v1186
      %v1188 = vadd.f32 %v1187, 1.1283791
      %v1189 = vmul.f32 %v560, %v1188
      %v1190 = vmul.f32 %v1178, 3.8918573e-05
      %v1191 = vadd.f32 %v1190, 0.001143296
      %v1192 = vmul.f32 %v1178, %v1191
      %v1193 = vadd.f32 %v1192, 0.014752088
      %v1194 = vmul.f32 %v1178, %v1193
      %v1195 = vadd.f32 %v1194, 0.112945676
      %v1196 = vmul.f32 %v1178, %v1195
      %v1197 = vadd.f32 %v1196, 0.4994258
      %v1198 = vmul.f32 %v1178, %v1197
      %v1199 = vadd.f32 %v1198, 1.0
      %v1200 = vrcp.pop %v1199
      %v1201 = vmul.f32 %v1199, %v1200
      %v1202 = vsub.f32 1.0, %v1201
      %v1203 = vmul.f32 %v1200, %v1202
      %v1204 = vadd.f32 %v1200, %v1203
      %vm1205 = vweird.f32 %v1199
      %vm1206 = vweird.f32 %v1200
      %vm1207 = vmor %vm1205, %vm1206
      %v1208 = vsel %vm1207, %v1200, %v1204
      %v1209 = vand.u32 2147483647, %v1199
      %vm1210 = vcmp.eq.f32.partialorder %v1209, 8.507059e+37
      %v1211 = vand.u32 %v1199, 2147483648
      %v1212 = vor.u32 1.1754944e-38, %v1211
      %v1213 = vsel %vm1210, %v1212, %v1208
      %v1214 = vmul.f32 %v1189, %v1213
      %v1215 = vmin.f32 %v1214, 1.0
      %v1216 = vmax.f32 %v1215, -1.0
      %v1217 = vmul.f32 %v561, %v561
      %v1218 = vmin.f32 16.0, %v1217
      %v1219 = vmul.f32 %v1218, 2.1237322e-06
      %v1220 = vadd.f32 %v1219, 0.00028619796
      %v1221 = vmul.f32 %v1218, %v1220
      %v1222 = vadd.f32 %v1221, 0.0036580483
      %v1223 = vmul.f32 %v1218, %v1222
      %v1224 = vadd.f32 %v1223, 0.05243302
      %v1225 = vmul.f32 %v1218, %v1224
      %v1226 = vadd.f32 %v1225, 0.18741608
      %v1227 = vmul.f32 %v1218, %v1226
      %v1228 = vadd.f32 %v1227, 1.1283791
      %v1229 = vmul.f32 %v561, %v1228
      %v1230 = vmul.f32 %v1218, 3.8918573e-05
      %v1231 = vadd.f32 %v1230, 0.001143296
      %v1232 = vmul.f32 %v1218, %v1231
      %v1233 = vadd.f32 %v1232, 0.014752088
      %v1234 = vmul.f32 %v1218, %v1233
      %v1235 = vadd.f32 %v1234, 0.112945676
      %v1236 = vmul.f32 %v1218, %v1235
      %v1237 = vadd.f32 %v1236, 0.4994258
      %v1238 = vmul.f32 %v1218, %v1237
      %v1239 = vadd.f32 %v1238, 1.0
      %v1240 = vrcp.pop %v1239
      %v1241 = vmul.f32 %v1239, %v1240
      %v1242 = vsub.f32 1.0, %v1241
      %v1243 = vmul.f32 %v1240, %v1242
      %v1244 = vadd.f32 %v1240, %v1243
      %vm1245 = vweird.f32 %v1239
      %vm1246 = vweird.f32 %v1240
      %vm1247 = vmor %vm1245, %vm1246
      %v1248 = vsel %vm1247, %v1240, %v1244
      %v1249 = vand.u32 2147483647, %v1239
      %vm1250 = vcmp.eq.f32.partialorder %v1249, 8.507059e+37
      %v1251 = vand.u32 %v1239, 2147483648
      %v1252 = vor.u32 1.1754944e-38, %v1251
      %v1253 = vsel %vm1250, %v1252, %v1248
      %v1254 = vmul.f32 %v1229, %v1253
      %v1255 = vmin.f32 %v1254, 1.0
      %v1256 = vmax.f32 %v1255, -1.0
      %v1257 = vmul.f32 %v562, %v562
      %v1258 = vmin.f32 16.0, %v1257
      %v1259 = vmul.f32 %v1258, 2.1237322e-06
      %v1260 = vadd.f32 %v1259, 0.00028619796
      %v1261 = vmul.f32 %v1258, %v1260
      %v1262 = vadd.f32 %v1261, 0.0036580483
      %v1263 = vmul.f32 %v1258, %v1262
      %v1264 = vadd.f32 %v1263, 0.05243302
      %v1265 = vmul.f32 %v1258, %v1264
      %v1266 = vadd.f32 %v1265, 0.18741608
      %v1267 = vmul.f32 %v1258, %v1266
      %v1268 = vadd.f32 %v1267, 1.1283791
      %v1269 = vmul.f32 %v562, %v1268
      %v1270 = vmul.f32 %v1258, 3.8918573e-05
      %v1271 = vadd.f32 %v1270, 0.001143296
      %v1272 = vmul.f32 %v1258, %v1271
      %v1273 = vadd.f32 %v1272, 0.014752088
      %v1274 = vmul.f32 %v1258, %v1273
      %v1275 = vadd.f32 %v1274, 0.112945676
      %v1276 = vmul.f32 %v1258, %v1275
      %v1277 = vadd.f32 %v1276, 0.4994258
      %v1278 = vmul.f32 %v1258, %v1277
      %v1279 = vadd.f32 %v1278, 1.0
      %v1280 = vrcp.pop %v1279
      %v1281 = vmul.f32 %v1279, %v1280
      %v1282 = vsub.f32 1.0, %v1281
      %v1283 = vmul.f32 %v1280, %v1282
      %v1284 = vadd.f32 %v1280, %v1283
      %vm1285 = vweird.f32 %v1279
      %vm1286 = vweird.f32 %v1280
      %vm1287 = vmor %vm1285, %vm1286
      %v1288 = vsel %vm1287, %v1280, %v1284
      %v1289 = vand.u32 2147483647, %v1279
      %vm1290 = vcmp.eq.f32.partialorder %v1289, 8.507059e+37
      %v1291 = vand.u32 %v1279, 2147483648
      %v1292 = vor.u32 1.1754944e-38, %v1291
      %v1293 = vsel %vm1290, %v1292, %v1288
      %v1294 = vmul.f32 %v1269, %v1293
      %v1295 = vmin.f32 %v1294, 1.0
      %v1296 = vmax.f32 %v1295, -1.0
      %v1297 = vmul.f32 %v563, %v563
      %v1298 = vmin.f32 16.0, %v1297
      %v1299 = vmul.f32 %v1298, 2.1237322e-06
      %v1300 = vadd.f32 %v1299, 0.00028619796
      %v1301 = vmul.f32 %v1298, %v1300
      %v1302 = vadd.f32 %v1301, 0.0036580483
      %v1303 = vmul.f32 %v1298, %v1302
      %v1304 = vadd.f32 %v1303, 0.05243302
      %v1305 = vmul.f32 %v1298, %v1304
      %v1306 = vadd.f32 %v1305, 0.18741608
      %v1307 = vmul.f32 %v1298, %v1306
      %v1308 = vadd.f32 %v1307, 1.1283791
      %v1309 = vmul.f32 %v563, %v1308
      %v1310 = vmul.f32 %v1298, 3.8918573e-05
      %v1311 = vadd.f32 %v1310, 0.001143296
      %v1312 = vmul.f32 %v1298, %v1311
      %v1313 = vadd.f32 %v1312, 0.014752088
      %v1314 = vmul.f32 %v1298, %v1313
      %v1315 = vadd.f32 %v1314, 0.112945676
      %v1316 = vmul.f32 %v1298, %v1315
      %v1317 = vadd.f32 %v1316, 0.4994258
      %v1318 = vmul.f32 %v1298, %v1317
      %v1319 = vadd.f32 %v1318, 1.0
      %v1320 = vrcp.pop %v1319
      %v1321 = vmul.f32 %v1319, %v1320
      %v1322 = vsub.f32 1.0, %v1321
      %v1323 = vmul.f32 %v1320, %v1322
      %v1324 = vadd.f32 %v1320, %v1323
      %vm1325 = vweird.f32 %v1319
      %vm1326 = vweird.f32 %v1320
      %vm1327 = vmor %vm1325, %vm1326
      %v1328 = vsel %vm1327, %v1320, %v1324
      %v1329 = vand.u32 2147483647, %v1319
      %vm1330 = vcmp.eq.f32.partialorder %v1329, 8.507059e+37
      %v1331 = vand.u32 %v1319, 2147483648
      %v1332 = vor.u32 1.1754944e-38, %v1331
      %v1333 = vsel %vm1330, %v1332, %v1328
      %v1334 = vmul.f32 %v1309, %v1333
      %v1335 = vmin.f32 %v1334, 1.0
      %v1336 = vmax.f32 %v1335, -1.0
      %v1337 = vmul.f32 %v564, %v564
      %v1338 = vmin.f32 16.0, %v1337
      %v1339 = vmul.f32 %v1338, 2.1237322e-06
      %v1340 = vadd.f32 %v1339, 0.00028619796
      %v1341 = vmul.f32 %v1338, %v1340
      %v1342 = vadd.f32 %v1341, 0.0036580483
      %v1343 = vmul.f32 %v1338, %v1342
      %v1344 = vadd.f32 %v1343, 0.05243302
      %v1345 = vmul.f32 %v1338, %v1344
      %v1346 = vadd.f32 %v1345, 0.18741608
      %v1347 = vmul.f32 %v1338, %v1346
      %v1348 = vadd.f32 %v1347, 1.1283791
      %v1349 = vmul.f32 %v564, %v1348
      %v1350 = vmul.f32 %v1338, 3.8918573e-05
      %v1351 = vadd.f32 %v1350, 0.001143296
      %v1352 = vmul.f32 %v1338, %v1351
      %v1353 = vadd.f32 %v1352, 0.014752088
      %v1354 = vmul.f32 %v1338, %v1353
      %v1355 = vadd.f32 %v1354, 0.112945676
      %v1356 = vmul.f32 %v1338, %v1355
      %v1357 = vadd.f32 %v1356, 0.4994258
      %v1358 = vmul.f32 %v1338, %v1357
      %v1359 = vadd.f32 %v1358, 1.0
      %v1360 = vrcp.pop %v1359
      %v1361 = vmul.f32 %v1359, %v1360
      %v1362 = vsub.f32 1.0, %v1361
      %v1363 = vmul.f32 %v1360, %v1362
      %v1364 = vadd.f32 %v1360, %v1363
      %vm1365 = vweird.f32 %v1359
      %vm1366 = vweird.f32 %v1360
      %vm1367 = vmor %vm1365, %vm1366
      %v1368 = vsel %vm1367, %v1360, %v1364
      %v1369 = vand.u32 2147483647, %v1359
      %vm1370 = vcmp.eq.f32.partialorder %v1369, 8.507059e+37
      %v1371 = vand.u32 %v1359, 2147483648
      %v1372 = vor.u32 1.1754944e-38, %v1371
      %v1373 = vsel %vm1370, %v1372, %v1368
      %v1374 = vmul.f32 %v1349, %v1373
      %v1375 = vmin.f32 %v1374, 1.0
      %v1376 = vmax.f32 %v1375, -1.0
      %v1377 = vmul.f32 %v565, %v565
      %v1378 = vmin.f32 16.0, %v1377
      %v1379 = vmul.f32 %v1378, 2.1237322e-06
      %v1380 = vadd.f32 %v1379, 0.00028619796
      %v1381 = vmul.f32 %v1378, %v1380
      %v1382 = vadd.f32 %v1381, 0.0036580483
      %v1383 = vmul.f32 %v1378, %v1382
      %v1384 = vadd.f32 %v1383, 0.05243302
      %v1385 = vmul.f32 %v1378, %v1384
      %v1386 = vadd.f32 %v1385, 0.18741608
      %v1387 = vmul.f32 %v1378, %v1386
      %v1388 = vadd.f32 %v1387, 1.1283791
      %v1389 = vmul.f32 %v565, %v1388
      %v1390 = vmul.f32 %v1378, 3.8918573e-05
      %v1391 = vadd.f32 %v1390, 0.001143296
      %v1392 = vmul.f32 %v1378, %v1391
      %v1393 = vadd.f32 %v1392, 0.014752088
      %v1394 = vmul.f32 %v1378, %v1393
      %v1395 = vadd.f32 %v1394, 0.112945676
      %v1396 = vmul.f32 %v1378, %v1395
      %v1397 = vadd.f32 %v1396, 0.4994258
      %v1398 = vmul.f32 %v1378, %v1397
      %v1399 = vadd.f32 %v1398, 1.0
      %v1400 = vrcp.pop %v1399
      %v1401 = vmul.f32 %v1399, %v1400
      %v1402 = vsub.f32 1.0, %v1401
      %v1403 = vmul.f32 %v1400, %v1402
      %v1404 = vadd.f32 %v1400, %v1403
      %vm1405 = vweird.f32 %v1399
      %vm1406 = vweird.f32 %v1400
      %vm1407 = vmor %vm1405, %vm1406
      %v1408 = vsel %vm1407, %v1400, %v1404
      %v1409 = vand.u32 2147483647, %v1399
      %vm1410 = vcmp.eq.f32.partialorder %v1409, 8.507059e+37
      %v1411 = vand.u32 %v1399, 2147483648
      %v1412 = vor.u32 1.1754944e-38, %v1411
      %v1413 = vsel %vm1410, %v1412, %v1408
      %v1414 = vmul.f32 %v1389, %v1413
      %v1415 = vmin.f32 %v1414, 1.0
      %v1416 = vmax.f32 %v1415, -1.0
      %v1417 = vmul.f32 %v566, %v566
      %v1418 = vmin.f32 16.0, %v1417
      %v1419 = vmul.f32 %v1418, 2.1237322e-06
      %v1420 = vadd.f32 %v1419, 0.00028619796
      %v1421 = vmul.f32 %v1418, %v1420
      %v1422 = vadd.f32 %v1421, 0.0036580483
      %v1423 = vmul.f32 %v1418, %v1422
      %v1424 = vadd.f32 %v1423, 0.05243302
      %v1425 = vmul.f32 %v1418, %v1424
      %v1426 = vadd.f32 %v1425, 0.18741608
      %v1427 = vmul.f32 %v1418, %v1426
      %v1428 = vadd.f32 %v1427, 1.1283791
      %v1429 = vmul.f32 %v566, %v1428
      %v1430 = vmul.f32 %v1418, 3.8918573e-05
      %v1431 = vadd.f32 %v1430, 0.001143296
      %v1432 = vmul.f32 %v1418, %v1431
      %v1433 = vadd.f32 %v1432, 0.014752088
      %v1434 = vmul.f32 %v1418, %v1433
      %v1435 = vadd.f32 %v1434, 0.112945676
      %v1436 = vmul.f32 %v1418, %v1435
      %v1437 = vadd.f32 %v1436, 0.4994258
      %v1438 = vmul.f32 %v1418, %v1437
      %v1439 = vadd.f32 %v1438, 1.0
      %v1440 = vrcp.pop %v1439
      %v1441 = vmul.f32 %v1439, %v1440
      %v1442 = vsub.f32 1.0, %v1441
      %v1443 = vmul.f32 %v1440, %v1442
      %v1444 = vadd.f32 %v1440, %v1443
      %vm1445 = vweird.f32 %v1439
      %vm1446 = vweird.f32 %v1440
      %vm1447 = vmor %vm1445, %vm1446
      %v1448 = vsel %vm1447, %v1440, %v1444
      %v1449 = vand.u32 2147483647, %v1439
      %vm1450 = vcmp.eq.f32.partialorder %v1449, 8.507059e+37
      %v1451 = vand.u32 %v1439, 2147483648
      %v1452 = vor.u32 1.1754944e-38, %v1451
      %v1453 = vsel %vm1450, %v1452, %v1448
      %v1454 = vmul.f32 %v1429, %v1453
      %v1455 = vmin.f32 %v1454, 1.0
      %v1456 = vmax.f32 %v1455, -1.0
      %v1457 = vmul.f32 %v567, %v567
      %v1458 = vmin.f32 16.0, %v1457
      %v1459 = vmul.f32 %v1458, 2.1237322e-06
      %v1460 = vadd.f32 %v1459, 0.00028619796
      %v1461 = vmul.f32 %v1458, %v1460
      %v1462 = vadd.f32 %v1461, 0.0036580483
      %v1463 = vmul.f32 %v1458, %v1462
      %v1464 = vadd.f32 %v1463, 0.05243302
      %v1465 = vmul.f32 %v1458, %v1464
      %v1466 = vadd.f32 %v1465, 0.18741608
      %v1467 = vmul.f32 %v1458, %v1466
      %v1468 = vadd.f32 %v1467, 1.1283791
      %v1469 = vmul.f32 %v567, %v1468
      %v1470 = vmul.f32 %v1458, 3.8918573e-05
      %v1471 = vadd.f32 %v1470, 0.001143296
      %v1472 = vmul.f32 %v1458, %v1471
      %v1473 = vadd.f32 %v1472, 0.014752088
      %v1474 = vmul.f32 %v1458, %v1473
      %v1475 = vadd.f32 %v1474, 0.112945676
      %v1476 = vmul.f32 %v1458, %v1475
      %v1477 = vadd.f32 %v1476, 0.4994258
      %v1478 = vmul.f32 %v1458, %v1477
      %v1479 = vadd.f32 %v1478, 1.0
      %v1480 = vrcp.pop %v1479
      %v1481 = vmul.f32 %v1479, %v1480
      %v1482 = vsub.f32 1.0, %v1481
      %v1483 = vmul.f32 %v1480, %v1482
      %v1484 = vadd.f32 %v1480, %v1483
      %vm1485 = vweird.f32 %v1479
      %vm1486 = vweird.f32 %v1480
      %vm1487 = vmor %vm1485, %vm1486
      %v1488 = vsel %vm1487, %v1480, %v1484
      %v1489 = vand.u32 2147483647, %v1479
      %vm1490 = vcmp.eq.f32.partialorder %v1489, 8.507059e+37
      %v1491 = vand.u32 %v1479, 2147483648
      %v1492 = vor.u32 1.1754944e-38, %v1491
      %v1493 = vsel %vm1490, %v1492, %v1488
      %v1494 = vmul.f32 %v1469, %v1493
      %v1495 = vmin.f32 %v1494, 1.0
      %v1496 = vmax.f32 %v1495, -1.0
      %v1497 = vmul.f32 %v568, %v568
      %v1498 = vmin.f32 16.0, %v1497
      %v1499 = vmul.f32 %v1498, 2.1237322e-06
      %v1500 = vadd.f32 %v1499, 0.00028619796
      %v1501 = vmul.f32 %v1498, %v1500
      %v1502 = vadd.f32 %v1501, 0.0036580483
      %v1503 = vmul.f32 %v1498, %v1502
      %v1504 = vadd.f32 %v1503, 0.05243302
      %v1505 = vmul.f32 %v1498, %v1504
      %v1506 = vadd.f32 %v1505, 0.18741608
      %v1507 = vmul.f32 %v1498, %v1506
      %v1508 = vadd.f32 %v1507, 1.1283791
      %v1509 = vmul.f32 %v568, %v1508
      %v1510 = vmul.f32 %v1498, 3.8918573e-05
      %v1511 = vadd.f32 %v1510, 0.001143296
      %v1512 = vmul.f32 %v1498, %v1511
      %v1513 = vadd.f32 %v1512, 0.014752088
      %v1514 = vmul.f32 %v1498, %v1513
      %v1515 = vadd.f32 %v1514, 0.112945676
      %v1516 = vmul.f32 %v1498, %v1515
      %v1517 = vadd.f32 %v1516, 0.4994258
      %v1518 = vmul.f32 %v1498, %v1517
      %v1519 = vadd.f32 %v1518, 1.0
      %v1520 = vrcp.pop %v1519
      %v1521 = vmul.f32 %v1519, %v1520
      %v1522 = vsub.f32 1.0, %v1521
      %v1523 = vmul.f32 %v1520, %v1522
      %v1524 = vadd.f32 %v1520, %v1523
      %vm1525 = vweird.f32 %v1519
      %vm1526 = vweird.f32 %v1520
      %vm1527 = vmor %vm1525, %vm1526
      %v1528 = vsel %vm1527, %v1520, %v1524
      %v1529 = vand.u32 2147483647, %v1519
      %vm1530 = vcmp.eq.f32.partialorder %v1529, 8.507059e+37
      %v1531 = vand.u32 %v1519, 2147483648
      %v1532 = vor.u32 1.1754944e-38, %v1531
      %v1533 = vsel %vm1530, %v1532, %v1528
      %v1534 = vmul.f32 %v1509, %v1533
      %v1535 = vmin.f32 %v1534, 1.0
      %v1536 = vmax.f32 %v1535, -1.0
      %v1537 = vmul.f32 %v569, %v569
      %v1538 = vmin.f32 16.0, %v1537
      %v1539 = vmul.f32 %v1538, 2.1237322e-06
      %v1540 = vadd.f32 %v1539, 0.00028619796
      %v1541 = vmul.f32 %v1538, %v1540
      %v1542 = vadd.f32 %v1541, 0.0036580483
      %v1543 = vmul.f32 %v1538, %v1542
      %v1544 = vadd.f32 %v1543, 0.05243302
      %v1545 = vmul.f32 %v1538, %v1544
      %v1546 = vadd.f32 %v1545, 0.18741608
      %v1547 = vmul.f32 %v1538, %v1546
      %v1548 = vadd.f32 %v1547, 1.1283791
      %v1549 = vmul.f32 %v569, %v1548
      %v1550 = vmul.f32 %v1538, 3.8918573e-05
      %v1551 = vadd.f32 %v1550, 0.001143296
      %v1552 = vmul.f32 %v1538, %v1551
      %v1553 = vadd.f32 %v1552, 0.014752088
      %v1554 = vmul.f32 %v1538, %v1553
      %v1555 = vadd.f32 %v1554, 0.112945676
      %v1556 = vmul.f32 %v1538, %v1555
      %v1557 = vadd.f32 %v1556, 0.4994258
      %v1558 = vmul.f32 %v1538, %v1557
      %v1559 = vadd.f32 %v1558, 1.0
      %v1560 = vrcp.pop %v1559
      %v1561 = vmul.f32 %v1559, %v1560
      %v1562 = vsub.f32 1.0, %v1561
      %v1563 = vmul.f32 %v1560, %v1562
      %v1564 = vadd.f32 %v1560, %v1563
      %vm1565 = vweird.f32 %v1559
      %vm1566 = vweird.f32 %v1560
      %vm1567 = vmor %vm1565, %vm1566
      %v1568 = vsel %vm1567, %v1560, %v1564
      %v1569 = vand.u32 2147483647, %v1559
      %vm1570 = vcmp.eq.f32.partialorder %v1569, 8.507059e+37
      %v1571 = vand.u32 %v1559, 2147483648
      %v1572 = vor.u32 1.1754944e-38, %v1571
      %v1573 = vsel %vm1570, %v1572, %v1568
      %v1574 = vmul.f32 %v1549, %v1573
      %v1575 = vmin.f32 %v1574, 1.0
      %v1576 = vmax.f32 %v1575, -1.0
      %v1577 = vmul.f32 %v570, %v570
      %v1578 = vmin.f32 16.0, %v1577
      %v1579 = vmul.f32 %v1578, 2.1237322e-06
      %v1580 = vadd.f32 %v1579, 0.00028619796
      %v1581 = vmul.f32 %v1578, %v1580
      %v1582 = vadd.f32 %v1581, 0.0036580483
      %v1583 = vmul.f32 %v1578, %v1582
      %v1584 = vadd.f32 %v1583, 0.05243302
      %v1585 = vmul.f32 %v1578, %v1584
      %v1586 = vadd.f32 %v1585, 0.18741608
      %v1587 = vmul.f32 %v1578, %v1586
      %v1588 = vadd.f32 %v1587, 1.1283791
      %v1589 = vmul.f32 %v570, %v1588
      %v1590 = vmul.f32 %v1578, 3.8918573e-05
      %v1591 = vadd.f32 %v1590, 0.001143296
      %v1592 = vmul.f32 %v1578, %v1591
      %v1593 = vadd.f32 %v1592, 0.014752088
      %v1594 = vmul.f32 %v1578, %v1593
      %v1595 = vadd.f32 %v1594, 0.112945676
      %v1596 = vmul.f32 %v1578, %v1595
      %v1597 = vadd.f32 %v1596, 0.4994258
      %v1598 = vmul.f32 %v1578, %v1597
      %v1599 = vadd.f32 %v1598, 1.0
      %v1600 = vrcp.pop %v1599
      %v1601 = vmul.f32 %v1599, %v1600
      %v1602 = vsub.f32 1.0, %v1601
      %v1603 = vmul.f32 %v1600, %v1602
      %v1604 = vadd.f32 %v1600, %v1603
      %vm1605 = vweird.f32 %v1599
      %vm1606 = vweird.f32 %v1600
      %vm1607 = vmor %vm1605, %vm1606
      %v1608 = vsel %vm1607, %v1600, %v1604
      %v1609 = vand.u32 2147483647, %v1599
      %vm1610 = vcmp.eq.f32.partialorder %v1609, 8.507059e+37
      %v1611 = vand.u32 %v1599, 2147483648
      %v1612 = vor.u32 1.1754944e-38, %v1611
      %v1613 = vsel %vm1610, %v1612, %v1608
      %v1614 = vmul.f32 %v1589, %v1613
      %v1615 = vmin.f32 %v1614, 1.0
      %v1616 = vmax.f32 %v1615, -1.0
      %v1617 = vmul.f32 %v571, %v571
      %v1618 = vmin.f32 16.0, %v1617
      %v1619 = vmul.f32 %v1618, 2.1237322e-06
      %v1620 = vadd.f32 %v1619, 0.00028619796
      %v1621 = vmul.f32 %v1618, %v1620
      %v1622 = vadd.f32 %v1621, 0.0036580483
      %v1623 = vmul.f32 %v1618, %v1622
      %v1624 = vadd.f32 %v1623, 0.05243302
      %v1625 = vmul.f32 %v1618, %v1624
      %v1626 = vadd.f32 %v1625, 0.18741608
      %v1627 = vmul.f32 %v1618, %v1626
      %v1628 = vadd.f32 %v1627, 1.1283791
      %v1629 = vmul.f32 %v571, %v1628
      %v1630 = vmul.f32 %v1618, 3.8918573e-05
      %v1631 = vadd.f32 %v1630, 0.001143296
      %v1632 = vmul.f32 %v1618, %v1631
      %v1633 = vadd.f32 %v1632, 0.014752088
      %v1634 = vmul.f32 %v1618, %v1633
      %v1635 = vadd.f32 %v1634, 0.112945676
      %v1636 = vmul.f32 %v1618, %v1635
      %v1637 = vadd.f32 %v1636, 0.4994258
      %v1638 = vmul.f32 %v1618, %v1637
      %v1639 = vadd.f32 %v1638, 1.0
      %v1640 = vrcp.pop %v1639
      %v1641 = vmul.f32 %v1639, %v1640
      %v1642 = vsub.f32 1.0, %v1641
      %v1643 = vmul.f32 %v1640, %v1642
      %v1644 = vadd.f32 %v1640, %v1643
      %vm1645 = vweird.f32 %v1639
      %vm1646 = vweird.f32 %v1640
      %vm1647 = vmor %vm1645, %vm1646
      %v1648 = vsel %vm1647, %v1640, %v1644
      %v1649 = vand.u32 2147483647, %v1639
      %vm1650 = vcmp.eq.f32.partialorder %v1649, 8.507059e+37
      %v1651 = vand.u32 %v1639, 2147483648
      %v1652 = vor.u32 1.1754944e-38, %v1651
      %v1653 = vsel %vm1650, %v1652, %v1648
      %v1654 = vmul.f32 %v1629, %v1653
      %v1655 = vmin.f32 %v1654, 1.0
      %v1656 = vmax.f32 %v1655, -1.0
      %v1657 = vmul.f32 %v572, %v572
      %v1658 = vmin.f32 16.0, %v1657
      %v1659 = vmul.f32 %v1658, 2.1237322e-06
      %v1660 = vadd.f32 %v1659, 0.00028619796
      %v1661 = vmul.f32 %v1658, %v1660
      %v1662 = vadd.f32 %v1661, 0.0036580483
      %v1663 = vmul.f32 %v1658, %v1662
      %v1664 = vadd.f32 %v1663, 0.05243302
      %v1665 = vmul.f32 %v1658, %v1664
      %v1666 = vadd.f32 %v1665, 0.18741608
      %v1667 = vmul.f32 %v1658, %v1666
      %v1668 = vadd.f32 %v1667, 1.1283791
      %v1669 = vmul.f32 %v572, %v1668
      %v1670 = vmul.f32 %v1658, 3.8918573e-05
      %v1671 = vadd.f32 %v1670, 0.001143296
      %v1672 = vmul.f32 %v1658, %v1671
      %v1673 = vadd.f32 %v1672, 0.014752088
      %v1674 = vmul.f32 %v1658, %v1673
      %v1675 = vadd.f32 %v1674, 0.112945676
      %v1676 = vmul.f32 %v1658, %v1675
      %v1677 = vadd.f32 %v1676, 0.4994258
      %v1678 = vmul.f32 %v1658, %v1677
      %v1679 = vadd.f32 %v1678, 1.0
      %v1680 = vrcp.pop %v1679
      %v1681 = vmul.f32 %v1679, %v1680
      %v1682 = vsub.f32 1.0, %v1681
      %v1683 = vmul.f32 %v1680, %v1682
      %v1684 = vadd.f32 %v1680, %v1683
      %vm1685 = vweird.f32 %v1679
      %vm1686 = vweird.f32 %v1680
      %vm1687 = vmor %vm1685, %vm1686
      %v1688 = vsel %vm1687, %v1680, %v1684
      %v1689 = vand.u32 2147483647, %v1679
      %vm1690 = vcmp.eq.f32.partialorder %v1689, 8.507059e+37
      %v1691 = vand.u32 %v1679, 2147483648
      %v1692 = vor.u32 1.1754944e-38, %v1691
      %v1693 = vsel %vm1690, %v1692, %v1688
      %v1694 = vmul.f32 %v1669, %v1693
      %v1695 = vmin.f32 %v1694, 1.0
      %v1696 = vmax.f32 %v1695, -1.0
      %v1697 = vmul.f32 %v573, %v573
      %v1698 = vmin.f32 16.0, %v1697
      %v1699 = vmul.f32 %v1698, 2.1237322e-06
      %v1700 = vadd.f32 %v1699, 0.00028619796
      %v1701 = vmul.f32 %v1698, %v1700
      %v1702 = vadd.f32 %v1701, 0.0036580483
      %v1703 = vmul.f32 %v1698, %v1702
      %v1704 = vadd.f32 %v1703, 0.05243302
      %v1705 = vmul.f32 %v1698, %v1704
      %v1706 = vadd.f32 %v1705, 0.18741608
      %v1707 = vmul.f32 %v1698, %v1706
      %v1708 = vadd.f32 %v1707, 1.1283791
      %v1709 = vmul.f32 %v573, %v1708
      %v1710 = vmul.f32 %v1698, 3.8918573e-05
      %v1711 = vadd.f32 %v1710, 0.001143296
      %v1712 = vmul.f32 %v1698, %v1711
      %v1713 = vadd.f32 %v1712, 0.014752088
      %v1714 = vmul.f32 %v1698, %v1713
      %v1715 = vadd.f32 %v1714, 0.112945676
      %v1716 = vmul.f32 %v1698, %v1715
      %v1717 = vadd.f32 %v1716, 0.4994258
      %v1718 = vmul.f32 %v1698, %v1717
      %v1719 = vadd.f32 %v1718, 1.0
      %v1720 = vrcp.pop %v1719
      %v1721 = vmul.f32 %v1719, %v1720
      %v1722 = vsub.f32 1.0, %v1721
      %v1723 = vmul.f32 %v1720, %v1722
      %v1724 = vadd.f32 %v1720, %v1723
      %vm1725 = vweird.f32 %v1719
      %vm1726 = vweird.f32 %v1720
      %vm1727 = vmor %vm1725, %vm1726
      %v1728 = vsel %vm1727, %v1720, %v1724
      %v1729 = vand.u32 2147483647, %v1719
      %vm1730 = vcmp.eq.f32.partialorder %v1729, 8.507059e+37
      %v1731 = vand.u32 %v1719, 2147483648
      %v1732 = vor.u32 1.1754944e-38, %v1731
      %v1733 = vsel %vm1730, %v1732, %v1728
      %v1734 = vmul.f32 %v1709, %v1733
      %v1735 = vmin.f32 %v1734, 1.0
      %v1736 = vmax.f32 %v1735, -1.0
      %v1737 = vmul.f32 %v574, %v574
      %v1738 = vmin.f32 16.0, %v1737
      %v1739 = vmul.f32 %v1738, 2.1237322e-06
      %v1740 = vadd.f32 %v1739, 0.00028619796
      %v1741 = vmul.f32 %v1738, %v1740
      %v1742 = vadd.f32 %v1741, 0.0036580483
      %v1743 = vmul.f32 %v1738, %v1742
      %v1744 = vadd.f32 %v1743, 0.05243302
      %v1745 = vmul.f32 %v1738, %v1744
      %v1746 = vadd.f32 %v1745, 0.18741608
      %v1747 = vmul.f32 %v1738, %v1746
      %v1748 = vadd.f32 %v1747, 1.1283791
      %v1749 = vmul.f32 %v574, %v1748
      %v1750 = vmul.f32 %v1738, 3.8918573e-05
      %v1751 = vadd.f32 %v1750, 0.001143296
      %v1752 = vmul.f32 %v1738, %v1751
      %v1753 = vadd.f32 %v1752, 0.014752088
      %v1754 = vmul.f32 %v1738, %v1753
      %v1755 = vadd.f32 %v1754, 0.112945676
      %v1756 = vmul.f32 %v1738, %v1755
      %v1757 = vadd.f32 %v1756, 0.4994258
      %v1758 = vmul.f32 %v1738, %v1757
      %v1759 = vadd.f32 %v1758, 1.0
      %v1760 = vrcp.pop %v1759
      %v1761 = vmul.f32 %v1759, %v1760
      %v1762 = vsub.f32 1.0, %v1761
      %v1763 = vmul.f32 %v1760, %v1762
      %v1764 = vadd.f32 %v1760, %v1763
      %vm1765 = vweird.f32 %v1759
      %vm1766 = vweird.f32 %v1760
      %vm1767 = vmor %vm1765, %vm1766
      %v1768 = vsel %vm1767, %v1760, %v1764
      %v1769 = vand.u32 2147483647, %v1759
      %vm1770 = vcmp.eq.f32.partialorder %v1769, 8.507059e+37
      %v1771 = vand.u32 %v1759, 2147483648
      %v1772 = vor.u32 1.1754944e-38, %v1771
      %v1773 = vsel %vm1770, %v1772, %v1768
      %v1774 = vmul.f32 %v1749, %v1773
      %v1775 = vmin.f32 %v1774, 1.0
      %v1776 = vmax.f32 %v1775, -1.0
      %v1777 = vmul.f32 %v575, %v575
      %v1778 = vmin.f32 16.0, %v1777
      %v1779 = vmul.f32 %v1778, 2.1237322e-06
      %v1780 = vadd.f32 %v1779, 0.00028619796
      %v1781 = vmul.f32 %v1778, %v1780
      %v1782 = vadd.f32 %v1781, 0.0036580483
      %v1783 = vmul.f32 %v1778, %v1782
      %v1784 = vadd.f32 %v1783, 0.05243302
      %v1785 = vmul.f32 %v1778, %v1784
      %v1786 = vadd.f32 %v1785, 0.18741608
      %v1787 = vmul.f32 %v1778, %v1786
      %v1788 = vadd.f32 %v1787, 1.1283791
      %v1789 = vmul.f32 %v575, %v1788
      %v1790 = vmul.f32 %v1778, 3.8918573e-05
      %v1791 = vadd.f32 %v1790, 0.001143296
      %v1792 = vmul.f32 %v1778, %v1791
      %v1793 = vadd.f32 %v1792, 0.014752088
      %v1794 = vmul.f32 %v1778, %v1793
      %v1795 = vadd.f32 %v1794, 0.112945676
      %v1796 = vmul.f32 %v1778, %v1795
      %v1797 = vadd.f32 %v1796, 0.4994258
      %v1798 = vmul.f32 %v1778, %v1797
      %v1799 = vadd.f32 %v1798, 1.0
      %v1800 = vrcp.pop %v1799
      %v1801 = vmul.f32 %v1799, %v1800
      %v1802 = vsub.f32 1.0, %v1801
      %v1803 = vmul.f32 %v1800, %v1802
      %v1804 = vadd.f32 %v1800, %v1803
      %vm1805 = vweird.f32 %v1799
      %vm1806 = vweird.f32 %v1800
      %vm1807 = vmor %vm1805, %vm1806
      %v1808 = vsel %vm1807, %v1800, %v1804
      %v1809 = vand.u32 2147483647, %v1799
      %vm1810 = vcmp.eq.f32.partialorder %v1809, 8.507059e+37
      %v1811 = vand.u32 %v1799, 2147483648
      %v1812 = vor.u32 1.1754944e-38, %v1811
      %v1813 = vsel %vm1810, %v1812, %v1808
      %v1814 = vmul.f32 %v1789, %v1813
      %v1815 = vmin.f32 %v1814, 1.0
      %v1816 = vmax.f32 %v1815, -1.0
      %v1817 = vmul.f32 %v576, %v576
      %v1818 = vmin.f32 16.0, %v1817
      %v1819 = vmul.f32 %v1818, 2.1237322e-06
      %v1820 = vadd.f32 %v1819, 0.00028619796
      %v1821 = vmul.f32 %v1818, %v1820
      %v1822 = vadd.f32 %v1821, 0.0036580483
      %v1823 = vmul.f32 %v1818, %v1822
      %v1824 = vadd.f32 %v1823, 0.05243302
      %v1825 = vmul.f32 %v1818, %v1824
      %v1826 = vadd.f32 %v1825, 0.18741608
      %v1827 = vmul.f32 %v1818, %v1826
      %v1828 = vadd.f32 %v1827, 1.1283791
      %v1829 = vmul.f32 %v576, %v1828
      %v1830 = vmul.f32 %v1818, 3.8918573e-05
      %v1831 = vadd.f32 %v1830, 0.001143296
      %v1832 = vmul.f32 %v1818, %v1831
      %v1833 = vadd.f32 %v1832, 0.014752088
      %v1834 = vmul.f32 %v1818, %v1833
      %v1835 = vadd.f32 %v1834, 0.112945676
      %v1836 = vmul.f32 %v1818, %v1835
      %v1837 = vadd.f32 %v1836, 0.4994258
      %v1838 = vmul.f32 %v1818, %v1837
      %v1839 = vadd.f32 %v1838, 1.0
      %v1840 = vrcp.pop %v1839
      %v1841 = vmul.f32 %v1839, %v1840
      %v1842 = vsub.f32 1.0, %v1841
      %v1843 = vmul.f32 %v1840, %v1842
      %v1844 = vadd.f32 %v1840, %v1843
      %vm1845 = vweird.f32 %v1839
      %vm1846 = vweird.f32 %v1840
      %vm1847 = vmor %vm1845, %vm1846
      %v1848 = vsel %vm1847, %v1840, %v1844
      %v1849 = vand.u32 2147483647, %v1839
      %vm1850 = vcmp.eq.f32.partialorder %v1849, 8.507059e+37
      %v1851 = vand.u32 %v1839, 2147483648
      %v1852 = vor.u32 1.1754944e-38, %v1851
      %v1853 = vsel %vm1850, %v1852, %v1848
      %v1854 = vmul.f32 %v1829, %v1853
      %v1855 = vmin.f32 %v1854, 1.0
      %v1856 = vmax.f32 %v1855, -1.0
      %v1857 = vadd.f32 %v616, 1.0
      %v1858 = vadd.f32 %v656, 1.0
      %v1859 = vadd.f32 %v696, 1.0
      %v1860 = vadd.f32 %v736, 1.0
      %v1861 = vadd.f32 %v776, 1.0
      %v1862 = vadd.f32 %v816, 1.0
      %v1863 = vadd.f32 %v856, 1.0
      %v1864 = vadd.f32 %v896, 1.0
      %v1865 = vadd.f32 %v936, 1.0
      %v1866 = vadd.f32 %v976, 1.0
      %v1867 = vadd.f32 %v1016, 1.0
      %v1868 = vadd.f32 %v1056, 1.0
      %v1869 = vadd.f32 %v1096, 1.0
      %v1870 = vadd.f32 %v1136, 1.0
      %v1871 = vadd.f32 %v1176, 1.0
      %v1872 = vadd.f32 %v1216, 1.0
      %v1873 = vadd.f32 %v1256, 1.0
      %v1874 = vadd.f32 %v1296, 1.0
      %v1875 = vadd.f32 %v1336, 1.0
      %v1876 = vadd.f32 %v1376, 1.0
      %v1877 = vadd.f32 %v1416, 1.0
      %v1878 = vadd.f32 %v1456, 1.0
      %v1879 = vadd.f32 %v1496, 1.0
      %v1880 = vadd.f32 %v1536, 1.0
      %v1881 = vadd.f32 %v1576, 1.0
      %v1882 = vadd.f32 %v1616, 1.0
      %v1883 = vadd.f32 %v1656, 1.0
      %v1884 = vadd.f32 %v1696, 1.0
      %v1885 = vadd.f32 %v1736, 1.0
      %v1886 = vadd.f32 %v1776, 1.0
      %v1887 = vadd.f32 %v1816, 1.0
      %v1888 = vadd.f32 %v1856, 1.0
      %v1889 = vmul.f32 %v513, %v1857
      %v1890 = vmul.f32 %v514, %v1858
      %v1891 = vmul.f32 %v515, %v1859
      %v1892 = vmul.f32 %v516, %v1860
      %v1893 = vmul.f32 %v517, %v1861
      %v1894 = vmul.f32 %v518, %v1862
      %v1895 = vmul.f32 %v519, %v1863
      %v1896 = vmul.f32 %v520, %v1864
      %v1897 = vmul.f32 %v521, %v1865
      %v1898 = vmul.f32 %v522, %v1866
      %v1899 = vmul.f32 %v523, %v1867
      %v1900 = vmul.f32 %v524, %v1868
      %v1901 = vmul.f32 %v525, %v1869
      %v1902 = vmul.f32 %v526, %v1870
      %v1903 = vmul.f32 %v527, %v1871
      %v1904 = vmul.f32 %v528, %v1872
      %v1905 = vmul.f32 %v529, %v1873
      %v1906 = vmul.f32 %v530, %v1874
      %v1907 = vmul.f32 %v531, %v1875
      %v1908 = vmul.f32 %v532, %v1876
      %v1909 = vmul.f32 %v533, %v1877
      %v1910 = vmul.f32 %v534, %v1878
      %v1911 = vmul.f32 %v535, %v1879
      %v1912 = vmul.f32 %v536, %v1880
      %v1913 = vmul.f32 %v537, %v1881
      %v1914 = vmul.f32 %v538, %v1882
      %v1915 = vmul.f32 %v539, %v1883
      %v1916 = vmul.f32 %v540, %v1884
      %v1917 = vmul.f32 %v541, %v1885
      %v1918 = vmul.f32 %v542, %v1886
      %v1919 = vmul.f32 %v543, %v1887
      %v1920 = vmul.f32 %v544, %v1888
      %v1921 = vpack.c.bf16 %v1890, %v1889
      %v1922 = vpack.c.bf16 %v1892, %v1891
      %v1923 = vpack.c.bf16 %v1894, %v1893
      %v1924 = vpack.c.bf16 %v1896, %v1895
      %v1925 = vpack.c.bf16 %v1898, %v1897
      %v1926 = vpack.c.bf16 %v1900, %v1899
      %v1927 = vpack.c.bf16 %v1902, %v1901
      %v1928 = vpack.c.bf16 %v1904, %v1903
      %v1929 = vpack.c.bf16 %v1906, %v1905
      %v1930 = vpack.c.bf16 %v1908, %v1907
      %v1931 = vpack.c.bf16 %v1910, %v1909
      %v1932 = vpack.c.bf16 %v1912, %v1911
      %v1933 = vpack.c.bf16 %v1914, %v1913
      %v1934 = vpack.c.bf16 %v1916, %v1915
      %v1935 = vpack.c.bf16 %v1918, %v1917
      %v1936 = vpack.c.bf16 %v1920, %v1919
      %v1937 = vld [vmem:[%s3] sm:$0xf]
      %v1938 = vld [vmem:[%s3 + $0x4] sm:$0xf]
      %v1939 = vld [vmem:[%s3 + $0x8] sm:$0xf]
      %v1940 = vld [vmem:[%s3 + $0xc] sm:$0xf]
      %v1941 = vld [vmem:[%s3 + $0x10] sm:$0xf]
      %v1942 = vld [vmem:[%s3 + $0x14] sm:$0xf]
      %v1943 = vld [vmem:[%s3 + $0x18] sm:$0xf]
      %v1944 = vld [vmem:[%s3 + $0x1c] sm:$0xf]
      %v1945 = vld [vmem:[%s3 + $0x20] sm:$0xf]
      %v1946 = vld [vmem:[%s3 + $0x24] sm:$0xf]
      %v1947 = vld [vmem:[%s3 + $0x28] sm:$0xf]
      %v1948 = vld [vmem:[%s3 + $0x2c] sm:$0xf]
      %v1949 = vld [vmem:[%s3 + $0x30] sm:$0xf]
      %v1950 = vld [vmem:[%s3 + $0x34] sm:$0xf]
      %v1951 = vld [vmem:[%s3 + $0x38] sm:$0xf]
      %v1952 = vld [vmem:[%s3 + $0x3c] sm:$0xf]
      %v1953 = vld [vmem:[%s4] sm:$0x1]
      %v1955 = vperm.slane %v1953, 0
      %v1973 = vunpack.c.l.b16 %v1937
      %v1974 = vunpack.c.l.b16 %v1938
      %v1975 = vunpack.c.l.b16 %v1939
      %v1976 = vunpack.c.l.b16 %v1940
      %v1977 = vunpack.c.l.b16 %v1941
      %v1978 = vunpack.c.l.b16 %v1942
      %v1979 = vunpack.c.l.b16 %v1943
      %v1980 = vunpack.c.l.b16 %v1944
      %v1981 = vunpack.c.l.b16 %v1945
      %v1982 = vunpack.c.l.b16 %v1946
      %v1983 = vunpack.c.l.b16 %v1947
      %v1984 = vunpack.c.l.b16 %v1948
      %v1985 = vunpack.c.l.b16 %v1949
      %v1986 = vunpack.c.l.b16 %v1950
      %v1987 = vunpack.c.l.b16 %v1951
      %v1988 = vunpack.c.l.b16 %v1952
      %v1989 = vpack.c.b16 %v1974, %v1973
      %v1990 = vpack.c.b16 %v1976, %v1975
      %v1991 = vpack.c.b16 %v1978, %v1977
      %v1992 = vpack.c.b16 %v1980, %v1979
      %v1993 = vpack.c.b16 %v1982, %v1981
      %v1994 = vpack.c.b16 %v1984, %v1983
      %v1995 = vpack.c.b16 %v1986, %v1985
      %v1996 = vpack.c.b16 %v1988, %v1987
      %2005 = vmatpush.bf16.msra.mxu0 %v1996
      %2006 = vmatpush.bf16.msra.mxu0 %v1995
      %2007 = vmatpush.bf16.msra.mxu0 %v1994
      %2008 = vmatpush.bf16.msra.mxu0 %v1993
      %2009 = vmatpush.bf16.msra.mxu0 %v1992
      %2010 = vmatpush.bf16.msra.mxu0 %v1991
      %2011 = vmatpush.bf16.msra.mxu0 %v1990
      %2012 = vmatpush.bf16.msra.mxu0 %v1989
      %2013 = vmatmul.bf16.gmra.mxu0 %v1921
      %v2014 = vpop.f32.mrf.mxu0
      %v2015 = vadd.f32 %v1955, %v2014
      %v2016 = vpop.f32.mrf.mxu0
      %v2017 = vadd.f32 %v1955, %v2016
      %2018 = vmatmul.bf16.gmra.mxu0 %v1922
      %v2019 = vpop.f32.mrf.mxu0
      %v2020 = vadd.f32 %v1955, %v2019
      %v2021 = vpop.f32.mrf.mxu0
      %v2022 = vadd.f32 %v1955, %v2021
      %2023 = vmatmul.bf16.gmra.mxu0 %v1923
      %v2024 = vpop.f32.mrf.mxu0
      %v2025 = vadd.f32 %v1955, %v2024
      %v2026 = vpop.f32.mrf.mxu0
      %v2027 = vadd.f32 %v1955, %v2026
      %2028 = vmatmul.bf16.gmra.mxu0 %v1924
      %v2029 = vpop.f32.mrf.mxu0
      %v2030 = vadd.f32 %v1955, %v2029
      %v2031 = vpop.f32.mrf.mxu0
      %v2032 = vadd.f32 %v1955, %v2031
      %2033 = vmatmul.bf16.gmra.mxu0 %v1925
      %v2034 = vpop.f32.mrf.mxu0
      %v2035 = vadd.f32 %v1955, %v2034
      %v2036 = vpop.f32.mrf.mxu0
      %v2037 = vadd.f32 %v1955, %v2036
      %2038 = vmatmul.bf16.gmra.mxu0 %v1926
      %v2039 = vpop.f32.mrf.mxu0
      %v2040 = vadd.f32 %v1955, %v2039
      %v2041 = vpop.f32.mrf.mxu0
      %v2042 = vadd.f32 %v1955, %v2041
      %2043 = vmatmul.bf16.gmra.mxu0 %v1927
      %v2044 = vpop.f32.mrf.mxu0
      %v2045 = vadd.f32 %v1955, %v2044
      %v2046 = vpop.f32.mrf.mxu0
      %v2047 = vadd.f32 %v1955, %v2046
      %2048 = vmatmul.bf16.gmra.mxu0 %v1928
      %v2049 = vpop.f32.mrf.mxu0
      %v2050 = vadd.f32 %v1955, %v2049
      %v2051 = vpop.f32.mrf.mxu0
      %v2052 = vadd.f32 %v1955, %v2051
      %2053 = vmatmul.bf16.gmra.mxu0 %v1929
      %v2054 = vpop.f32.mrf.mxu0
      %v2055 = vadd.f32 %v1955, %v2054
      %v2056 = vpop.f32.mrf.mxu0
      %v2057 = vadd.f32 %v1955, %v2056
      %2058 = vmatmul.bf16.gmra.mxu0 %v1930
      %v2059 = vpop.f32.mrf.mxu0
      %v2060 = vadd.f32 %v1955, %v2059
      %v2061 = vpop.f32.mrf.mxu0
      %v2062 = vadd.f32 %v1955, %v2061
      %2063 = vmatmul.bf16.gmra.mxu0 %v1931
      %v2064 = vpop.f32.mrf.mxu0
      %v2065 = vadd.f32 %v1955, %v2064
      %v2066 = vpop.f32.mrf.mxu0
      %v2067 = vadd.f32 %v1955, %v2066
      %2068 = vmatmul.bf16.gmra.mxu0 %v1932
      %v2069 = vpop.f32.mrf.mxu0
      %v2070 = vadd.f32 %v1955, %v2069
      %v2071 = vpop.f32.mrf.mxu0
      %v2072 = vadd.f32 %v1955, %v2071
      %2073 = vmatmul.bf16.gmra.mxu0 %v1933
      %v2074 = vpop.f32.mrf.mxu0
      %v2075 = vadd.f32 %v1955, %v2074
      %v2076 = vpop.f32.mrf.mxu0
      %v2077 = vadd.f32 %v1955, %v2076
      %2078 = vmatmul.bf16.gmra.mxu0 %v1934
      %v2079 = vpop.f32.mrf.mxu0
      %v2080 = vadd.f32 %v1955, %v2079
      %v2081 = vpop.f32.mrf.mxu0
      %v2082 = vadd.f32 %v1955, %v2081
      %2083 = vmatmul.bf16.gmra.mxu0 %v1935
      %v2084 = vpop.f32.mrf.mxu0
      %v2085 = vadd.f32 %v1955, %v2084
      %v2086 = vpop.f32.mrf.mxu0
      %v2087 = vadd.f32 %v1955, %v2086
      %2088 = vmatmul.bf16.gmra.mxu0 %v1936
      %v2089 = vpop.f32.mrf.mxu0
      %v2090 = vadd.f32 %v1955, %v2089
      %v2091 = vpop.f32.mrf.mxu0
      %v2092 = vadd.f32 %v1955, %v2091
      %2093 = vdwg.mxu0
      %2094 = vst [vmem:[%s226] sm:$0xff] %v2015
      %2095 = vst [vmem:[%s226 + $0x8] sm:$0xff] %v2017
      %2096 = vst [vmem:[%s226 + $0x10] sm:$0xff] %v2020
      %2097 = vst [vmem:[%s226 + $0x18] sm:$0xff] %v2022
      %2098 = vst [vmem:[%s226 + $0x20] sm:$0xff] %v2025
      %2099 = vst [vmem:[%s226 + $0x28] sm:$0xff] %v2027
      %2100 = vst [vmem:[%s226 + $0x30] sm:$0xff] %v2030
      %2101 = vst [vmem:[%s226 + $0x38] sm:$0xff] %v2032
      %2102 = vst [vmem:[%s226 + $0x40] sm:$0xff] %v2035
      %2103 = vst [vmem:[%s226 + $0x48] sm:$0xff] %v2037
      %2104 = vst [vmem:[%s226 + $0x50] sm:$0xff] %v2040
      %2105 = vst [vmem:[%s226 + $0x58] sm:$0xff] %v2042
      %2106 = vst [vmem:[%s226 + $0x60] sm:$0xff] %v2045
      %2107 = vst [vmem:[%s226 + $0x68] sm:$0xff] %v2047
      %2108 = vst [vmem:[%s226 + $0x70] sm:$0xff] %v2050
      %2109 = vst [vmem:[%s226 + $0x78] sm:$0xff] %v2052
      %2110 = vst [vmem:[%s226 + $0x80] sm:$0xff] %v2055
      %2111 = vst [vmem:[%s226 + $0x88] sm:$0xff] %v2057
      %2112 = vst [vmem:[%s226 + $0x90] sm:$0xff] %v2060
      %2113 = vst [vmem:[%s226 + $0x98] sm:$0xff] %v2062
      %2114 = vst [vmem:[%s226 + $0xa0] sm:$0xff] %v2065
      %2115 = vst [vmem:[%s226 + $0xa8] sm:$0xff] %v2067
      %2116 = vst [vmem:[%s226 + $0xb0] sm:$0xff] %v2070
      %2117 = vst [vmem:[%s226 + $0xb8] sm:$0xff] %v2072
      %2118 = vst [vmem:[%s226 + $0xc0] sm:$0xff] %v2075
      %2119 = vst [vmem:[%s226 + $0xc8] sm:$0xff] %v2077
      %2120 = vst [vmem:[%s226 + $0xd0] sm:$0xff] %v2080
      %2121 = vst [vmem:[%s226 + $0xd8] sm:$0xff] %v2082
      %2122 = vst [vmem:[%s226 + $0xe0] sm:$0xff] %v2085
      %2123 = vst [vmem:[%s226 + $0xe8] sm:$0xff] %v2087
      %2124 = vst [vmem:[%s226 + $0xf0] sm:$0xff] %v2090
      %2125 = vst [vmem:[%s226 + $0xf8] sm:$0xff] %v2092
      %s2126 = smul.u32 32, %s16
      %p2127 = scmp.lt.s32.totalorder %s2126, 63
      %s2128 = scalar_select %p2127, %s2126, 63
      %s2129 = smul.addr %s2128, 8
      %s2130 = scalar_lea.vmem %s5, %s2129
      // Predicated region
      $region41: #{_lambda_.1} parent=39 // pred_check
        %p2131 = pneg %p144
      $region42: #{_lambda_.1} parent=39 // pred_check_branch
        %2133 = sbr.rel (%p2131) target = $region44
      $region43: #{_lambda_.1} parent=39 // pred_region
        %s2134 = smul.u32 32, %s16
      $region44: #{_lambda_.1} parent=39 // pred_fallthru
        _
    $region40: #{_lambda_.1} parent=5 // pred_fallthru
      _
    %p2135 = scmp.le.s32.totalorder 2, %s11
    // Predicated region
    $region45: #{_lambda_.1} parent=5 // pred_check
      %p2136 = pneg %p2135
    $region46: #{_lambda_.1} parent=5 // pred_check_branch
      %2138 = sbr.rel (%p2136) target = $region48
    $region47: #{_lambda_.1} parent=5 // pred_region
      %s2139 = ssub.s32 %s11, 2
      // Predicated region
      $region49: #{_lambda_.1} parent=47 // pred_check
        %p2140 = pneg %p150
      $region50: #{_lambda_.1} parent=47 // pred_check_branch
        %2142 = sbr.rel (%p2140) target = $region52
      $region51: #{_lambda_.1} parent=47 // pred_region
        %s2143 = smul.u32 32, %s17
        %p2144 = scmp.lt.s32.totalorder %s2143, 63
        %s2145 = scalar_select %p2144, %s2143, 63
        %s2146 = smul.addr %s2145, 8
        %s2147 = scalar_lea.vmem %s5, %s2146
      $region52: #{_lambda_.1} parent=47 // pred_fallthru
        _
    $region48: #{_lambda_.1} parent=5 // pred_fallthru
      _
  $region6: #{_lambda_.1} parent=0 // loop_footer
    %s15 = sadd.s32 1, %s11
  $region7: #{_lambda_.1} parent=0 // loop_footer_branch
    %10 = sbr.rel target = $region3
  $region8: #{_lambda_.1} parent=0 // loop_exit
    _

</llo_original>
